<compile_context>
chip_gen: v7x
topology: tpu7x:2x2x1
jax: 0.10.0
libtpu: 0.0.40
codegen_flags: <defaults>
</compile_context>

<pallas_src>
import functools

import jax
import jax.numpy as jnp
from jax import lax
from jax.experimental import pallas as pl
from jax.experimental.pallas import tpu as pltpu

# ---------------------------- model configuration ----------------------------
VOCAB = 32
EMBED_DIM = 16
WORD_HIDDEN = 8
SENT_HIDDEN = 8
NUM_CLASSES = 4
SENT_LENGTH = 2        # module arg sent_length
MAX_SENT_LENGTH = 4    # module arg max_sent_length
BN_EPS = 1e-5

# -------------------------- packed-parameter layout ---------------------------
# Every parameter lives at a static (row, col) offset inside one f32 slab so the
# kernel only needs 2 input DMAs (ids + slab).
_PARAM_SHAPES = (
    ("embedding", (VOCAB, EMBED_DIM)),
    ("word_wx",   (EMBED_DIM, 8 * WORD_HIDDEN)),        # [fwd i,f,g,o | bwd i,f,g,o]
    ("word_wh",   (WORD_HIDDEN, 8 * WORD_HIDDEN)),
    ("word_b",    (1, 8 * WORD_HIDDEN)),                 # b_ih + b_hh, both dirs
    ("word_a1",   (2 * WORD_HIDDEN, WORD_HIDDEN)),
    ("word_a1b",  (1, WORD_HIDDEN)),
    ("word_a2",   (WORD_HIDDEN, 1)),
    ("word_a2b",  (1, 1)),
    ("word_bn",   (4, 2 * WORD_HIDDEN)),                 # gamma, beta, mean, var
    ("sent_wx",   (2 * WORD_HIDDEN, 8 * SENT_HIDDEN)),
    ("sent_wh",   (SENT_HIDDEN, 8 * SENT_HIDDEN)),
    ("sent_b",    (1, 8 * SENT_HIDDEN)),
    ("sent_a1",   (2 * SENT_HIDDEN, SENT_HIDDEN)),
    ("sent_a1b",  (1, SENT_HIDDEN)),
    ("sent_a2",   (SENT_HIDDEN, 1)),
    ("sent_a2b",  (1, 1)),
    ("sent_bn",   (4, 2 * SENT_HIDDEN)),
    ("fc_w",      (2 * SENT_HIDDEN, NUM_CLASSES)),
    ("fc_b",      (1, NUM_CLASSES)),
)


def _build_layout():
    layout, row, lanes = {}, 0, 0
    for name, (r, c) in _PARAM_SHAPES:
        layout[name] = (row, (r, c))
        row += r
        lanes = max(lanes, c)
    return layout, row, lanes


_LAYOUT, _SLAB_ROWS, _SLAB_LANES = _build_layout()


def pack_params(param_dict):
    slab = jnp.zeros((_SLAB_ROWS, _SLAB_LANES), jnp.float32)
    for name, (row, (r, c)) in _LAYOUT.items():
        slab = slab.at[row:row + r, :c].set(param_dict[name].astype(jnp.float32))
    return slab


# ------------------------- in-kernel building blocks -------------------------
def _bilstm(gx_all, T, N, H, Wh, b):
    """Fused bidirectional LSTM with the input projection hoisted out.

    gx_all : (T*N, 8H) precomputed x @ Wx, rows time-major (t*N + n); columns are
             [forward i,f,g,o | backward i,f,g,o].
    Wh     : (H, 8H) recurrent weights, same column layout.
    b      : (1, 8H) fused bias (b_ih + b_hh per direction).
    Returns hs_all: (T*N, 2H) bidirectional hidden states, rows time-major.
    """
    gx_all = gx_all + b
    # Per-step input contributions (independent of h -> off the serial chain).
    gx_steps = []
    for s in range(T):
        gf = gx_all[s * N:(s + 1) * N, :]                  # forward, time s
        gb = gx_all[(T - 1 - s) * N:(T - s) * N, :]        # backward, time T-1-s
        gx_steps.append(jnp.concatenate([gf, gb], axis=0))  # (2N, 8H)

    fmask = lax.broadcasted_iota(jnp.int32, (2 * N, 4 * H), 0) < N
    h = jnp.zeros((2 * N, H), jnp.float32)
    c = jnp.zeros((2 * N, H), jnp.float32)
    hf = [None] * T
    hb = [None] * T
    for s in range(T):
        # Only truly serial work per step: one (2N,H)@(H,8H) matmul + elementwise.
        g2 = gx_steps[s] + jnp.dot(h, Wh, preferred_element_type=jnp.float32)
        # forward rows use the first 4H gate columns, backward rows the last 4H
        g = jnp.where(fmask, g2[:, :4 * H], g2[:, 4 * H:])
        i = jax.nn.sigmoid(g[:, 0 * H:1 * H])
        f = jax.nn.sigmoid(g[:, 1 * H:2 * H])
        gg = jnp.tanh(g[:, 2 * H:3 * H])
        o = jax.nn.sigmoid(g[:, 3 * H:4 * H])
        c = f * c + i * gg
        h = o * jnp.tanh(c)
        hf[s] = h[:N]              # forward hidden for time s
        hb[T - 1 - s] = h[N:]      # backward hidden for time T-1-s
    hf_all = jnp.concatenate(hf, axis=0)                    # (T*N, H)
    hb_all = jnp.concatenate(hb, axis=0)                    # (T*N, H)
    # PyTorch bidirectional output: [h_fwd_t, h_bwd_t] per time step.
    return jnp.concatenate([hf_all, hb_all], axis=1)        # (T*N, 2H)


def _attention(hs_all, T, N, w1, b1, w2, b2):
    """Additive attention over time, batched across all T*N rows."""
    u = jnp.tanh(jnp.dot(hs_all, w1, preferred_element_type=jnp.float32) + b1)
    s = jnp.dot(u, w2, preferred_element_type=jnp.float32) + b2      # (T*N, 1)
    s_t = [s[t * N:(t + 1) * N, :] for t in range(T)]                # T x (N, 1)
    m = s_t[0]
    for t in range(1, T):
        m = jnp.maximum(m, s_t[t])
    e_t = [jnp.exp(st - m) for st in s_t]
    den = e_t[0]
    for t in range(1, T):
        den = den + e_t[t]
    inv = pl.reciprocal(den, approx=True)                            # softmax denom
    ctx = (e_t[0] * inv) * hs_all[0:N, :]
    for t in range(1, T):
        ctx = ctx + (e_t[t] * inv) * hs_all[t * N:(t + 1) * N, :]
    return ctx                                                       # (N, 2H)


def _batchnorm(x, bn):
    # bn rows: gamma, beta, running_mean, running_var (eval-mode stats)
    gamma, beta, mean, var = bn[0:1, :], bn[1:2, :], bn[2:3, :], bn[3:4, :]
    return (x - mean) * lax.rsqrt(var + BN_EPS) * gamma + beta


# --------------------------------- the kernel --------------------------------
def _han_kernel(ids_ref, slab_ref, out_ref, *, B, NS, WPS):
    Nw = B * NS                      # number of word sequences (row n = t*B + b)
    Rw = WPS * Nw                    # total tokens, rows time-major (s*Nw + n)
    slab = slab_ref[...]

    def P(name):
        row, (r, c) = _LAYOUT[name]
        return slab[row:row + r, :c]

    # ------------------------------ word level -------------------------------
    # One one-hot matmul for ALL tokens (no per-step iota/compare/gather), then a
    # single input-to-gate projection covering every timestep and both directions.
    onehot = (ids_ref[...] == lax.broadcasted_iota(jnp.int32, (Rw, VOCAB), 1)
              ).astype(jnp.float32)                                    # (Rw, VOCAB)
    x_all = jnp.dot(onehot, P("embedding"),
                    preferred_element_type=jnp.float32)                # (Rw, E)
    gx_word = jnp.dot(x_all, P("word_wx"),
                      preferred_element_type=jnp.float32)              # (Rw, 8H)

    hs_word = _bilstm(gx_word, WPS, Nw, WORD_HIDDEN, P("word_wh"), P("word_b"))
    w_ctx = _attention(hs_word, WPS, Nw, P("word_a1"), P("word_a1b"),
                       P("word_a2"), P("word_a2b"))
    w_ctx = _batchnorm(w_ctx, P("word_bn"))       # (Nw, 2*WORD_HIDDEN), row = t*B+b

    # ---------------------------- sentence level -----------------------------
    # Rows are already sentence-time-major, so the hoisted sentence input-gate
    # projection feeds _bilstm directly with contiguous per-timestep blocks.
    gx_sent = jnp.dot(w_ctx, P("sent_wx"),
                      preferred_element_type=jnp.float32)              # (NS*B, 8H)
    hs_sent = _bilstm(gx_sent, NS, B, SENT_HIDDEN, P("sent_wh"), P("sent_b"))
    doc = _attention(hs_sent, NS, B, P("sent_a1"), P("sent_a1b"),
                     P("sent_a2"), P("sent_a2b"))
    doc = _batchnorm(doc, P("sent_bn"))           # (B, 2*SENT_HIDDEN)

    # dropout is identity in eval mode; final classifier is the only HBM store.
    out_ref[...] = jnp.dot(doc, P("fc_w"),
                           preferred_element_type=jnp.float32) + P("fc_b")


# ------------------------------- parameters ----------------------------------
def init_params(key):
    ks = jax.random.split(key, 6)

    def w(k, shape, scale=0.1):
        return (scale * jax.random.normal(k, shape)).astype(jnp.float32)

    def lstm_params(k, in_dim, hid):
        k1, k2, k3, k4 = jax.random.split(k, 4)
        wx = jnp.concatenate([w(k1, (in_dim, 4 * hid)),
                              w(k2, (in_dim, 4 * hid))], axis=1)   # [fwd | bwd]
        wh = jnp.concatenate([w(k3, (hid, 4 * hid)),
                              w(k4, (hid, 4 * hid))], axis=1)
        bias = jnp.zeros((1, 8 * hid), jnp.float32)                # b_ih + b_hh = 0
        return wx, wh, bias

    def attn_params(k, in_dim, hid):
        k1, k2 = jax.random.split(k, 2)
        return (w(k1, (in_dim, hid)), jnp.zeros((1, hid), jnp.float32),
                w(k2, (hid, 1)), jnp.zeros((1, 1), jnp.float32))

    def bn_params(dim):
        # rows: gamma, beta, running_mean, running_var (eval-mode statistics)
        return jnp.concatenate([jnp.ones((1, dim), jnp.float32),
                                jnp.zeros((1, dim), jnp.float32),
                                jnp.zeros((1, dim), jnp.float32),
                                jnp.ones((1, dim), jnp.float32)], axis=0)

    word_wx, word_wh, word_b = lstm_params(ks[1], EMBED_DIM, WORD_HIDDEN)
    sent_wx, sent_wh, sent_b = lstm_params(ks[3], 2 * WORD_HIDDEN, SENT_HIDDEN)
    wa1, wa1b, wa2, wa2b = attn_params(ks[2], 2 * WORD_HIDDEN, WORD_HIDDEN)
    sa1, sa1b, sa2, sa2b = attn_params(ks[4], 2 * SENT_HIDDEN, SENT_HIDDEN)
    pd = {
        "embedding": w(ks[0], (VOCAB, EMBED_DIM), scale=1.0),
        "word_wx": word_wx, "word_wh": word_wh, "word_b": word_b,
        "word_a1": wa1, "word_a1b": wa1b, "word_a2": wa2, "word_a2b": wa2b,
        "word_bn": bn_params(2 * WORD_HIDDEN),
        "sent_wx": sent_wx, "sent_wh": sent_wh, "sent_b": sent_b,
        "sent_a1": sa1, "sent_a1b": sa1b, "sent_a2": sa2, "sent_a2b": sa2b,
        "sent_bn": bn_params(2 * SENT_HIDDEN),
        "fc_w": w(ks[5], (2 * SENT_HIDDEN, NUM_CLASSES)),
        "fc_b": jnp.zeros((1, NUM_CLASSES), jnp.float32),
    }
    # TODO(synk): init uses 0.1*normal / zero biases, not PyTorch's default
    # uniform(-1/sqrt(H), 1/sqrt(H)); structural match only.
    return {"slab": pack_params(pd)}


# --------------------------------- forward -----------------------------------
@functools.partial(jax.jit, static_argnames=("sent_length", "max_sent_length"))
def han_forward(params, x, sent_length=SENT_LENGTH, max_sent_length=MAX_SENT_LENGTH):
    B, S = x.shape
    num_sentences = max(1, min(sent_length, S // max_sent_length))
    words_per_sentence = max(1, min(max_sent_length, S // num_sentences))
    min_seq = num_sentences * words_per_sentence
    if S < min_seq:
        # TODO(synk): padded positions still receive attention weight (matches
        # the PyTorch reference, which also does not mask its zero-padding).
        x = jnp.pad(x, ((0, 0), (0, min_seq - S)))
    arr = x[:, :num_sentences * words_per_sentence].astype(jnp.int32)
    arr = arr.reshape(B, num_sentences, words_per_sentence)          # [b, t, s]
    # Token column, word-time-major and sentence-time-major:
    # row = s*(NS*B) + t*B + b.  All layout plumbing stays in the XLA wrapper.
    ids_col = jnp.transpose(arr, (2, 1, 0)).reshape(
        words_per_sentence * num_sentences * B, 1)

    kernel = functools.partial(_han_kernel, B=B, NS=num_sentences,
                               WPS=words_per_sentence)
    return pl.pallas_call(
        kernel,
        out_shape=jax.ShapeDtypeStruct((B, NUM_CLASSES), jnp.float32),
        in_specs=[pl.BlockSpec(memory_space=pltpu.MemorySpace.VMEM),
                  pl.BlockSpec(memory_space=pltpu.MemorySpace.VMEM)],
        out_specs=pl.BlockSpec(memory_space=pltpu.MemorySpace.VMEM),
    )(ids_col, params["slab"])


if __name__ == "__main__":
    key = jax.random.PRNGKey(0)
    pkey, xkey = jax.random.split(key)
    params = init_params(pkey)
    x = jax.random.randint(xkey, (2, 8), 0, VOCAB, dtype=jnp.int32)
    out = han_forward(params, x)
    out = jax.block_until_ready(out)
    assert out.shape == (2, NUM_CLASSES)
    assert bool(jnp.all(jnp.isfinite(out)))
    print("KERNEL_OK")
</pallas_src>

<mosaic_0001>
module attributes {stable_mosaic.version = 11 : i64} {
  func.func @_han_kernel(%arg0: memref<16x1xi32, #tpu.memory_space<vmem>>, %arg1: memref<159x64xf32, #tpu.memory_space<vmem>>, %arg2: memref<2x4xf32, #tpu.memory_space<vmem>>) attributes {dimension_semantics = [], scalar_prefetch = 0 : i64, scratch_operands = 0 : i64, tpu.core_type = #tpu.core_type<tc>} {
    %c0 = arith.constant 0 : index
    %c0_0 = arith.constant 0 : index
    %0 = vector.load %arg1[%c0, %c0_0] : memref<159x64xf32, #tpu.memory_space<vmem>>, vector<159x64xf32>
    %c0_1 = arith.constant 0 : index
    %c0_2 = arith.constant 0 : index
    %1 = vector.load %arg0[%c0_1, %c0_2] : memref<16x1xi32, #tpu.memory_space<vmem>>, vector<16x1xi32>
    %2 = tpu.iota {dimensions = array<i32: 1>} : vector<16x32xi32>
    %3 = vector.broadcast %1 : vector<16x1xi32> to vector<16x32xi32>
    %4 = arith.cmpi eq, %3, %2 : vector<16x32xi32>
    %5 = arith.extui %4 : vector<16x32xi1> to vector<16x32xi32>
    %6 = arith.sitofp %5 : vector<16x32xi32> to vector<16x32xf32>
    %7 = vector.extract_strided_slice %0 {offsets = [0, 0], sizes = [32, 16], strides = [1, 1]} : vector<159x64xf32> to vector<32x16xf32>
    %cst = arith.constant dense<0.000000e+00> : vector<16x16xf32>
    %8 = tpu.matmul %6, %7, %cst {dimension_numbers = #tpu.dot_dimension_numbers<[1], [0], [0], [1], [0, 0, 1, 1], [], []>} : vector<16x32xf32>, vector<32x16xf32>, vector<16x16xf32> -> vector<16x16xf32>
    %9 = vector.extract_strided_slice %0 {offsets = [32, 0], sizes = [16, 64], strides = [1, 1]} : vector<159x64xf32> to vector<16x64xf32>
    %cst_3 = arith.constant dense<0.000000e+00> : vector<16x64xf32>
    %10 = tpu.matmul %8, %9, %cst_3 {dimension_numbers = #tpu.dot_dimension_numbers<[1], [0], [0], [1], [0, 0, 1, 1], [], []>} : vector<16x16xf32>, vector<16x64xf32>, vector<16x64xf32> -> vector<16x64xf32>
    %11 = vector.extract_strided_slice %0 {offsets = [48, 0], sizes = [8, 64], strides = [1, 1]} : vector<159x64xf32> to vector<8x64xf32>
    %12 = vector.extract_strided_slice %0 {offsets = [56, 0], sizes = [1, 64], strides = [1, 1]} : vector<159x64xf32> to vector<1x64xf32>
    %13 = vector.broadcast %12 : vector<1x64xf32> to vector<16x64xf32>
    %14 = arith.addf %10, %13 : vector<16x64xf32>
    %15 = vector.extract_strided_slice %14 {offsets = [0, 0], sizes = [4, 64], strides = [1, 1]} : vector<16x64xf32> to vector<4x64xf32>
    %16 = vector.extract_strided_slice %14 {offsets = [12, 0], sizes = [4, 64], strides = [1, 1]} : vector<16x64xf32> to vector<4x64xf32>
    %17 = tpu.concatenate %15, %16 in 0 : vector<4x64xf32>, vector<4x64xf32> -> vector<8x64xf32>
    %18 = vector.extract_strided_slice %14 {offsets = [4, 0], sizes = [4, 64], strides = [1, 1]} : vector<16x64xf32> to vector<4x64xf32>
    %19 = vector.extract_strided_slice %14 {offsets = [8, 0], sizes = [4, 64], strides = [1, 1]} : vector<16x64xf32> to vector<4x64xf32>
    %20 = tpu.concatenate %18, %19 in 0 : vector<4x64xf32>, vector<4x64xf32> -> vector<8x64xf32>
    %21 = vector.extract_strided_slice %14 {offsets = [8, 0], sizes = [4, 64], strides = [1, 1]} : vector<16x64xf32> to vector<4x64xf32>
    %22 = vector.extract_strided_slice %14 {offsets = [4, 0], sizes = [4, 64], strides = [1, 1]} : vector<16x64xf32> to vector<4x64xf32>
    %23 = tpu.concatenate %21, %22 in 0 : vector<4x64xf32>, vector<4x64xf32> -> vector<8x64xf32>
    %24 = vector.extract_strided_slice %14 {offsets = [12, 0], sizes = [4, 64], strides = [1, 1]} : vector<16x64xf32> to vector<4x64xf32>
    %25 = vector.extract_strided_slice %14 {offsets = [0, 0], sizes = [4, 64], strides = [1, 1]} : vector<16x64xf32> to vector<4x64xf32>
    %26 = tpu.concatenate %24, %25 in 0 : vector<4x64xf32>, vector<4x64xf32> -> vector<8x64xf32>
    %27 = tpu.iota {dimensions = array<i32: 0>} : vector<8x32xi32>
    %c4_i32 = arith.constant 4 : i32
    %28 = vector.broadcast %c4_i32 : i32 to vector<8x32xi32>
    %29 = arith.cmpi slt, %27, %28 : vector<8x32xi32>
    %cst_4 = arith.constant 0.000000e+00 : f32
    %30 = vector.broadcast %cst_4 : f32 to vector<8x8xf32>
    %cst_5 = arith.constant 0.000000e+00 : f32
    %31 = vector.broadcast %cst_5 : f32 to vector<8x8xf32>
    %cst_6 = arith.constant dense<0.000000e+00> : vector<8x64xf32>
    %32 = tpu.matmul %30, %11, %cst_6 {dimension_numbers = #tpu.dot_dimension_numbers<[1], [0], [0], [1], [0, 0, 1, 1], [], []>} : vector<8x8xf32>, vector<8x64xf32>, vector<8x64xf32> -> vector<8x64xf32>
    %33 = arith.addf %17, %32 : vector<8x64xf32>
    %34 = vector.extract_strided_slice %33 {offsets = [0, 0], sizes = [8, 32], strides = [1, 1]} : vector<8x64xf32> to vector<8x32xf32>
    %35 = vector.extract_strided_slice %33 {offsets = [0, 32], sizes = [8, 32], strides = [1, 1]} : vector<8x64xf32> to vector<8x32xf32>
    %36 = arith.select %29, %34, %35 : vector<8x32xi1>, vector<8x32xf32>
    %37 = vector.extract_strided_slice %36 {offsets = [0, 0], sizes = [8, 8], strides = [1, 1]} : vector<8x32xf32> to vector<8x8xf32>
    %38 = arith.negf %37 : vector<8x8xf32>
    %39 = math.exp %38 : vector<8x8xf32>
    %cst_7 = arith.constant 1.000000e+00 : f32
    %40 = vector.broadcast %cst_7 : f32 to vector<8x8xf32>
    %41 = arith.addf %40, %39 : vector<8x8xf32>
    %42 = arith.divf %40, %41 : vector<8x8xf32>
    %43 = vector.extract_strided_slice %36 {offsets = [0, 8], sizes = [8, 8], strides = [1, 1]} : vector<8x32xf32> to vector<8x8xf32>
    %44 = arith.negf %43 : vector<8x8xf32>
    %45 = math.exp %44 : vector<8x8xf32>
    %cst_8 = arith.constant 1.000000e+00 : f32
    %46 = vector.broadcast %cst_8 : f32 to vector<8x8xf32>
    %47 = arith.addf %46, %45 : vector<8x8xf32>
    %48 = arith.divf %46, %47 : vector<8x8xf32>
    %49 = vector.extract_strided_slice %36 {offsets = [0, 16], sizes = [8, 8], strides = [1, 1]} : vector<8x32xf32> to vector<8x8xf32>
    %50 = math.tanh %49 : vector<8x8xf32>
    %51 = vector.extract_strided_slice %36 {offsets = [0, 24], sizes = [8, 8], strides = [1, 1]} : vector<8x32xf32> to vector<8x8xf32>
    %52 = arith.negf %51 : vector<8x8xf32>
    %53 = math.exp %52 : vector<8x8xf32>
    %cst_9 = arith.constant 1.000000e+00 : f32
    %54 = vector.broadcast %cst_9 : f32 to vector<8x8xf32>
    %55 = arith.addf %54, %53 : vector<8x8xf32>
    %56 = arith.divf %54, %55 : vector<8x8xf32>
    %57 = arith.mulf %48, %31 : vector<8x8xf32>
    %58 = arith.mulf %42, %50 : vector<8x8xf32>
    %59 = arith.addf %57, %58 : vector<8x8xf32>
    %60 = math.tanh %59 : vector<8x8xf32>
    %61 = arith.mulf %56, %60 : vector<8x8xf32>
    %62 = vector.extract_strided_slice %61 {offsets = [0, 0], sizes = [4, 8], strides = [1, 1]} : vector<8x8xf32> to vector<4x8xf32>
    %63 = vector.extract_strided_slice %61 {offsets = [4, 0], sizes = [4, 8], strides = [1, 1]} : vector<8x8xf32> to vector<4x8xf32>
    %cst_10 = arith.constant dense<0.000000e+00> : vector<8x64xf32>
    %64 = tpu.matmul %61, %11, %cst_10 {dimension_numbers = #tpu.dot_dimension_numbers<[1], [0], [0], [1], [0, 0, 1, 1], [], []>} : vector<8x8xf32>, vector<8x64xf32>, vector<8x64xf32> -> vector<8x64xf32>
    %65 = arith.addf %20, %64 : vector<8x64xf32>
    %66 = vector.extract_strided_slice %65 {offsets = [0, 0], sizes = [8, 32], strides = [1, 1]} : vector<8x64xf32> to vector<8x32xf32>
    %67 = vector.extract_strided_slice %65 {offsets = [0, 32], sizes = [8, 32], strides = [1, 1]} : vector<8x64xf32> to vector<8x32xf32>
    %68 = arith.select %29, %66, %67 : vector<8x32xi1>, vector<8x32xf32>
    %69 = vector.extract_strided_slice %68 {offsets = [0, 0], sizes = [8, 8], strides = [1, 1]} : vector<8x32xf32> to vector<8x8xf32>
    %70 = arith.negf %69 : vector<8x8xf32>
    %71 = math.exp %70 : vector<8x8xf32>
    %cst_11 = arith.constant 1.000000e+00 : f32
    %72 = vector.broadcast %cst_11 : f32 to vector<8x8xf32>
    %73 = arith.addf %72, %71 : vector<8x8xf32>
    %74 = arith.divf %72, %73 : vector<8x8xf32>
    %75 = vector.extract_strided_slice %68 {offsets = [0, 8], sizes = [8, 8], strides = [1, 1]} : vector<8x32xf32> to vector<8x8xf32>
    %76 = arith.negf %75 : vector<8x8xf32>
    %77 = math.exp %76 : vector<8x8xf32>
    %cst_12 = arith.constant 1.000000e+00 : f32
    %78 = vector.broadcast %cst_12 : f32 to vector<8x8xf32>
    %79 = arith.addf %78, %77 : vector<8x8xf32>
    %80 = arith.divf %78, %79 : vector<8x8xf32>
    %81 = vector.extract_strided_slice %68 {offsets = [0, 16], sizes = [8, 8], strides = [1, 1]} : vector<8x32xf32> to vector<8x8xf32>
    %82 = math.tanh %81 : vector<8x8xf32>
    %83 = vector.extract_strided_slice %68 {offsets = [0, 24], sizes = [8, 8], strides = [1, 1]} : vector<8x32xf32> to vector<8x8xf32>
    %84 = arith.negf %83 : vector<8x8xf32>
    %85 = math.exp %84 : vector<8x8xf32>
    %cst_13 = arith.constant 1.000000e+00 : f32
    %86 = vector.broadcast %cst_13 : f32 to vector<8x8xf32>
    %87 = arith.addf %86, %85 : vector<8x8xf32>
    %88 = arith.divf %86, %87 : vector<8x8xf32>
    %89 = arith.mulf %80, %59 : vector<8x8xf32>
    %90 = arith.mulf %74, %82 : vector<8x8xf32>
    %91 = arith.addf %89, %90 : vector<8x8xf32>
    %92 = math.tanh %91 : vector<8x8xf32>
    %93 = arith.mulf %88, %92 : vector<8x8xf32>
    %94 = vector.extract_strided_slice %93 {offsets = [0, 0], sizes = [4, 8], strides = [1, 1]} : vector<8x8xf32> to vector<4x8xf32>
    %95 = vector.extract_strided_slice %93 {offsets = [4, 0], sizes = [4, 8], strides = [1, 1]} : vector<8x8xf32> to vector<4x8xf32>
    %cst_14 = arith.constant dense<0.000000e+00> : vector<8x64xf32>
    %96 = tpu.matmul %93, %11, %cst_14 {dimension_numbers = #tpu.dot_dimension_numbers<[1], [0], [0], [1], [0, 0, 1, 1], [], []>} : vector<8x8xf32>, vector<8x64xf32>, vector<8x64xf32> -> vector<8x64xf32>
    %97 = arith.addf %23, %96 : vector<8x64xf32>
    %98 = vector.extract_strided_slice %97 {offsets = [0, 0], sizes = [8, 32], strides = [1, 1]} : vector<8x64xf32> to vector<8x32xf32>
    %99 = vector.extract_strided_slice %97 {offsets = [0, 32], sizes = [8, 32], strides = [1, 1]} : vector<8x64xf32> to vector<8x32xf32>
    %100 = arith.select %29, %98, %99 : vector<8x32xi1>, vector<8x32xf32>
    %101 = vector.extract_strided_slice %100 {offsets = [0, 0], sizes = [8, 8], strides = [1, 1]} : vector<8x32xf32> to vector<8x8xf32>
    %102 = arith.negf %101 : vector<8x8xf32>
    %103 = math.exp %102 : vector<8x8xf32>
    %cst_15 = arith.constant 1.000000e+00 : f32
    %104 = vector.broadcast %cst_15 : f32 to vector<8x8xf32>
    %105 = arith.addf %104, %103 : vector<8x8xf32>
    %106 = arith.divf %104, %105 : vector<8x8xf32>
    %107 = vector.extract_strided_slice %100 {offsets = [0, 8], sizes = [8, 8], strides = [1, 1]} : vector<8x32xf32> to vector<8x8xf32>
    %108 = arith.negf %107 : vector<8x8xf32>
    %109 = math.exp %108 : vector<8x8xf32>
    %cst_16 = arith.constant 1.000000e+00 : f32
    %110 = vector.broadcast %cst_16 : f32 to vector<8x8xf32>
    %111 = arith.addf %110, %109 : vector<8x8xf32>
    %112 = arith.divf %110, %111 : vector<8x8xf32>
    %113 = vector.extract_strided_slice %100 {offsets = [0, 16], sizes = [8, 8], strides = [1, 1]} : vector<8x32xf32> to vector<8x8xf32>
    %114 = math.tanh %113 : vector<8x8xf32>
    %115 = vector.extract_strided_slice %100 {offsets = [0, 24], sizes = [8, 8], strides = [1, 1]} : vector<8x32xf32> to vector<8x8xf32>
    %116 = arith.negf %115 : vector<8x8xf32>
    %117 = math.exp %116 : vector<8x8xf32>
    %cst_17 = arith.constant 1.000000e+00 : f32
    %118 = vector.broadcast %cst_17 : f32 to vector<8x8xf32>
    %119 = arith.addf %118, %117 : vector<8x8xf32>
    %120 = arith.divf %118, %119 : vector<8x8xf32>
    %121 = arith.mulf %112, %91 : vector<8x8xf32>
    %122 = arith.mulf %106, %114 : vector<8x8xf32>
    %123 = arith.addf %121, %122 : vector<8x8xf32>
    %124 = math.tanh %123 : vector<8x8xf32>
    %125 = arith.mulf %120, %124 : vector<8x8xf32>
    %126 = vector.extract_strided_slice %125 {offsets = [0, 0], sizes = [4, 8], strides = [1, 1]} : vector<8x8xf32> to vector<4x8xf32>
    %127 = vector.extract_strided_slice %125 {offsets = [4, 0], sizes = [4, 8], strides = [1, 1]} : vector<8x8xf32> to vector<4x8xf32>
    %cst_18 = arith.constant dense<0.000000e+00> : vector<8x64xf32>
    %128 = tpu.matmul %125, %11, %cst_18 {dimension_numbers = #tpu.dot_dimension_numbers<[1], [0], [0], [1], [0, 0, 1, 1], [], []>} : vector<8x8xf32>, vector<8x64xf32>, vector<8x64xf32> -> vector<8x64xf32>
    %129 = arith.addf %26, %128 : vector<8x64xf32>
    %130 = vector.extract_strided_slice %129 {offsets = [0, 0], sizes = [8, 32], strides = [1, 1]} : vector<8x64xf32> to vector<8x32xf32>
    %131 = vector.extract_strided_slice %129 {offsets = [0, 32], sizes = [8, 32], strides = [1, 1]} : vector<8x64xf32> to vector<8x32xf32>
    %132 = arith.select %29, %130, %131 : vector<8x32xi1>, vector<8x32xf32>
    %133 = vector.extract_strided_slice %132 {offsets = [0, 0], sizes = [8, 8], strides = [1, 1]} : vector<8x32xf32> to vector<8x8xf32>
    %134 = arith.negf %133 : vector<8x8xf32>
    %135 = math.exp %134 : vector<8x8xf32>
    %cst_19 = arith.constant 1.000000e+00 : f32
    %136 = vector.broadcast %cst_19 : f32 to vector<8x8xf32>
    %137 = arith.addf %136, %135 : vector<8x8xf32>
    %138 = arith.divf %136, %137 : vector<8x8xf32>
    %139 = vector.extract_strided_slice %132 {offsets = [0, 8], sizes = [8, 8], strides = [1, 1]} : vector<8x32xf32> to vector<8x8xf32>
    %140 = arith.negf %139 : vector<8x8xf32>
    %141 = math.exp %140 : vector<8x8xf32>
    %cst_20 = arith.constant 1.000000e+00 : f32
    %142 = vector.broadcast %cst_20 : f32 to vector<8x8xf32>
    %143 = arith.addf %142, %141 : vector<8x8xf32>
    %144 = arith.divf %142, %143 : vector<8x8xf32>
    %145 = vector.extract_strided_slice %132 {offsets = [0, 16], sizes = [8, 8], strides = [1, 1]} : vector<8x32xf32> to vector<8x8xf32>
    %146 = math.tanh %145 : vector<8x8xf32>
    %147 = vector.extract_strided_slice %132 {offsets = [0, 24], sizes = [8, 8], strides = [1, 1]} : vector<8x32xf32> to vector<8x8xf32>
    %148 = arith.negf %147 : vector<8x8xf32>
    %149 = math.exp %148 : vector<8x8xf32>
    %cst_21 = arith.constant 1.000000e+00 : f32
    %150 = vector.broadcast %cst_21 : f32 to vector<8x8xf32>
    %151 = arith.addf %150, %149 : vector<8x8xf32>
    %152 = arith.divf %150, %151 : vector<8x8xf32>
    %153 = arith.mulf %144, %123 : vector<8x8xf32>
    %154 = arith.mulf %138, %146 : vector<8x8xf32>
    %155 = arith.addf %153, %154 : vector<8x8xf32>
    %156 = math.tanh %155 : vector<8x8xf32>
    %157 = arith.mulf %152, %156 : vector<8x8xf32>
    %158 = vector.extract_strided_slice %157 {offsets = [0, 0], sizes = [4, 8], strides = [1, 1]} : vector<8x8xf32> to vector<4x8xf32>
    %159 = vector.extract_strided_slice %157 {offsets = [4, 0], sizes = [4, 8], strides = [1, 1]} : vector<8x8xf32> to vector<4x8xf32>
    %160 = tpu.concatenate %62, %94, %126, %158 in 0 : vector<4x8xf32>, vector<4x8xf32>, vector<4x8xf32>, vector<4x8xf32> -> vector<16x8xf32>
    %161 = tpu.concatenate %159, %127, %95, %63 in 0 : vector<4x8xf32>, vector<4x8xf32>, vector<4x8xf32>, vector<4x8xf32> -> vector<16x8xf32>
    %162 = tpu.concatenate %160, %161 in 1 : vector<16x8xf32>, vector<16x8xf32> -> vector<16x16xf32>
    %163 = vector.extract_strided_slice %0 {offsets = [57, 0], sizes = [16, 8], strides = [1, 1]} : vector<159x64xf32> to vector<16x8xf32>
    %164 = vector.extract_strided_slice %0 {offsets = [73, 0], sizes = [1, 8], strides = [1, 1]} : vector<159x64xf32> to vector<1x8xf32>
    %165 = vector.extract_strided_slice %0 {offsets = [74, 0], sizes = [8, 1], strides = [1, 1]} : vector<159x64xf32> to vector<8x1xf32>
    %166 = vector.extract_strided_slice %0 {offsets = [82, 0], sizes = [1, 1], strides = [1, 1]} : vector<159x64xf32> to vector<1x1xf32>
    %cst_22 = arith.constant dense<0.000000e+00> : vector<16x8xf32>
    %167 = tpu.matmul %162, %163, %cst_22 {dimension_numbers = #tpu.dot_dimension_numbers<[1], [0], [0], [1], [0, 0, 1, 1], [], []>} : vector<16x16xf32>, vector<16x8xf32>, vector<16x8xf32> -> vector<16x8xf32>
    %168 = vector.broadcast %164 : vector<1x8xf32> to vector<16x8xf32>
    %169 = arith.addf %167, %168 : vector<16x8xf32>
    %170 = math.tanh %169 : vector<16x8xf32>
    %cst_23 = arith.constant dense<0.000000e+00> : vector<16x1xf32>
    %171 = tpu.matmul %170, %165, %cst_23 {dimension_numbers = #tpu.dot_dimension_numbers<[1], [0], [0], [1], [0, 0, 1, 1], [], []>} : vector<16x8xf32>, vector<8x1xf32>, vector<16x1xf32> -> vector<16x1xf32>
    %172 = vector.broadcast %166 : vector<1x1xf32> to vector<16x1xf32>
    %173 = arith.addf %171, %172 : vector<16x1xf32>
    %174 = vector.extract_strided_slice %173 {offsets = [0, 0], sizes = [4, 1], strides = [1, 1]} : vector<16x1xf32> to vector<4x1xf32>
    %175 = vector.extract_strided_slice %173 {offsets = [4, 0], sizes = [4, 1], strides = [1, 1]} : vector<16x1xf32> to vector<4x1xf32>
    %176 = vector.extract_strided_slice %173 {offsets = [8, 0], sizes = [4, 1], strides = [1, 1]} : vector<16x1xf32> to vector<4x1xf32>
    %177 = vector.extract_strided_slice %173 {offsets = [12, 0], sizes = [4, 1], strides = [1, 1]} : vector<16x1xf32> to vector<4x1xf32>
    %178 = arith.maximumf %174, %175 : vector<4x1xf32>
    %179 = arith.maximumf %178, %176 : vector<4x1xf32>
    %180 = arith.maximumf %179, %177 : vector<4x1xf32>
    %181 = arith.subf %174, %180 : vector<4x1xf32>
    %182 = math.exp %181 : vector<4x1xf32>
    %183 = arith.subf %175, %180 : vector<4x1xf32>
    %184 = math.exp %183 : vector<4x1xf32>
    %185 = arith.subf %176, %180 : vector<4x1xf32>
    %186 = math.exp %185 : vector<4x1xf32>
    %187 = arith.subf %177, %180 : vector<4x1xf32>
    %188 = math.exp %187 : vector<4x1xf32>
    %189 = arith.addf %182, %184 : vector<4x1xf32>
    %190 = arith.addf %189, %186 : vector<4x1xf32>
    %191 = arith.addf %190, %188 : vector<4x1xf32>
    %192 = tpu.reciprocal %191 {approx = true} : vector<4x1xf32> -> vector<4x1xf32>
    %193 = arith.mulf %182, %192 : vector<4x1xf32>
    %194 = vector.extract_strided_slice %162 {offsets = [0, 0], sizes = [4, 16], strides = [1, 1]} : vector<16x16xf32> to vector<4x16xf32>
    %195 = vector.broadcast %193 : vector<4x1xf32> to vector<4x16xf32>
    %196 = arith.mulf %195, %194 : vector<4x16xf32>
    %197 = arith.mulf %184, %192 : vector<4x1xf32>
    %198 = vector.extract_strided_slice %162 {offsets = [4, 0], sizes = [4, 16], strides = [1, 1]} : vector<16x16xf32> to vector<4x16xf32>
    %199 = vector.broadcast %197 : vector<4x1xf32> to vector<4x16xf32>
    %200 = arith.mulf %199, %198 : vector<4x16xf32>
    %201 = arith.addf %196, %200 : vector<4x16xf32>
    %202 = arith.mulf %186, %192 : vector<4x1xf32>
    %203 = vector.extract_strided_slice %162 {offsets = [8, 0], sizes = [4, 16], strides = [1, 1]} : vector<16x16xf32> to vector<4x16xf32>
    %204 = vector.broadcast %202 : vector<4x1xf32> to vector<4x16xf32>
    %205 = arith.mulf %204, %203 : vector<4x16xf32>
    %206 = arith.addf %201, %205 : vector<4x16xf32>
    %207 = arith.mulf %188, %192 : vector<4x1xf32>
    %208 = vector.extract_strided_slice %162 {offsets = [12, 0], sizes = [4, 16], strides = [1, 1]} : vector<16x16xf32> to vector<4x16xf32>
    %209 = vector.broadcast %207 : vector<4x1xf32> to vector<4x16xf32>
    %210 = arith.mulf %209, %208 : vector<4x16xf32>
    %211 = arith.addf %206, %210 : vector<4x16xf32>
    %212 = vector.extract_strided_slice %0 {offsets = [83, 0], sizes = [4, 16], strides = [1, 1]} : vector<159x64xf32> to vector<4x16xf32>
    %213 = vector.extract_strided_slice %212 {offsets = [0, 0], sizes = [1, 16], strides = [1, 1]} : vector<4x16xf32> to vector<1x16xf32>
    %214 = vector.extract_strided_slice %212 {offsets = [1, 0], sizes = [1, 16], strides = [1, 1]} : vector<4x16xf32> to vector<1x16xf32>
    %215 = vector.extract_strided_slice %212 {offsets = [2, 0], sizes = [1, 16], strides = [1, 1]} : vector<4x16xf32> to vector<1x16xf32>
    %216 = vector.extract_strided_slice %212 {offsets = [3, 0], sizes = [1, 16], strides = [1, 1]} : vector<4x16xf32> to vector<1x16xf32>
    %217 = vector.broadcast %215 : vector<1x16xf32> to vector<4x16xf32>
    %218 = arith.subf %211, %217 : vector<4x16xf32>
    %cst_24 = arith.constant 9.99999974E-6 : f32
    %219 = vector.broadcast %cst_24 : f32 to vector<1x16xf32>
    %220 = arith.addf %216, %219 : vector<1x16xf32>
    %221 = math.rsqrt %220 : vector<1x16xf32>
    %222 = vector.broadcast %221 : vector<1x16xf32> to vector<4x16xf32>
    %223 = arith.mulf %218, %222 : vector<4x16xf32>
    %224 = vector.broadcast %213 : vector<1x16xf32> to vector<4x16xf32>
    %225 = arith.mulf %223, %224 : vector<4x16xf32>
    %226 = vector.broadcast %214 : vector<1x16xf32> to vector<4x16xf32>
    %227 = arith.addf %225, %226 : vector<4x16xf32>
    %228 = vector.extract_strided_slice %0 {offsets = [87, 0], sizes = [16, 64], strides = [1, 1]} : vector<159x64xf32> to vector<16x64xf32>
    %cst_25 = arith.constant dense<0.000000e+00> : vector<4x64xf32>
    %229 = tpu.matmul %227, %228, %cst_25 {dimension_numbers = #tpu.dot_dimension_numbers<[1], [0], [0], [1], [0, 0, 1, 1], [], []>} : vector<4x16xf32>, vector<16x64xf32>, vector<4x64xf32> -> vector<4x64xf32>
    %230 = vector.extract_strided_slice %0 {offsets = [103, 0], sizes = [8, 64], strides = [1, 1]} : vector<159x64xf32> to vector<8x64xf32>
    %231 = vector.extract_strided_slice %0 {offsets = [111, 0], sizes = [1, 64], strides = [1, 1]} : vector<159x64xf32> to vector<1x64xf32>
    %232 = vector.broadcast %231 : vector<1x64xf32> to vector<4x64xf32>
    %233 = arith.addf %229, %232 : vector<4x64xf32>
    %234 = vector.extract_strided_slice %233 {offsets = [0, 0], sizes = [2, 64], strides = [1, 1]} : vector<4x64xf32> to vector<2x64xf32>
    %235 = vector.extract_strided_slice %233 {offsets = [2, 0], sizes = [2, 64], strides = [1, 1]} : vector<4x64xf32> to vector<2x64xf32>
    %236 = tpu.concatenate %234, %235 in 0 : vector<2x64xf32>, vector<2x64xf32> -> vector<4x64xf32>
    %237 = vector.extract_strided_slice %233 {offsets = [2, 0], sizes = [2, 64], strides = [1, 1]} : vector<4x64xf32> to vector<2x64xf32>
    %238 = vector.extract_strided_slice %233 {offsets = [0, 0], sizes = [2, 64], strides = [1, 1]} : vector<4x64xf32> to vector<2x64xf32>
    %239 = tpu.concatenate %237, %238 in 0 : vector<2x64xf32>, vector<2x64xf32> -> vector<4x64xf32>
    %240 = tpu.iota {dimensions = array<i32: 0>} : vector<4x32xi32>
    %c2_i32 = arith.constant 2 : i32
    %241 = vector.broadcast %c2_i32 : i32 to vector<4x32xi32>
    %242 = arith.cmpi slt, %240, %241 : vector<4x32xi32>
    %cst_26 = arith.constant 0.000000e+00 : f32
    %243 = vector.broadcast %cst_26 : f32 to vector<4x8xf32>
    %cst_27 = arith.constant 0.000000e+00 : f32
    %244 = vector.broadcast %cst_27 : f32 to vector<4x8xf32>
    %cst_28 = arith.constant dense<0.000000e+00> : vector<4x64xf32>
    %245 = tpu.matmul %243, %230, %cst_28 {dimension_numbers = #tpu.dot_dimension_numbers<[1], [0], [0], [1], [0, 0, 1, 1], [], []>} : vector<4x8xf32>, vector<8x64xf32>, vector<4x64xf32> -> vector<4x64xf32>
    %246 = arith.addf %236, %245 : vector<4x64xf32>
    %247 = vector.extract_strided_slice %246 {offsets = [0, 0], sizes = [4, 32], strides = [1, 1]} : vector<4x64xf32> to vector<4x32xf32>
    %248 = vector.extract_strided_slice %246 {offsets = [0, 32], sizes = [4, 32], strides = [1, 1]} : vector<4x64xf32> to vector<4x32xf32>
    %249 = arith.select %242, %247, %248 : vector<4x32xi1>, vector<4x32xf32>
    %250 = vector.extract_strided_slice %249 {offsets = [0, 0], sizes = [4, 8], strides = [1, 1]} : vector<4x32xf32> to vector<4x8xf32>
    %251 = arith.negf %250 : vector<4x8xf32>
    %252 = math.exp %251 : vector<4x8xf32>
    %cst_29 = arith.constant 1.000000e+00 : f32
    %253 = vector.broadcast %cst_29 : f32 to vector<4x8xf32>
    %254 = arith.addf %253, %252 : vector<4x8xf32>
    %255 = arith.divf %253, %254 : vector<4x8xf32>
    %256 = vector.extract_strided_slice %249 {offsets = [0, 8], sizes = [4, 8], strides = [1, 1]} : vector<4x32xf32> to vector<4x8xf32>
    %257 = arith.negf %256 : vector<4x8xf32>
    %258 = math.exp %257 : vector<4x8xf32>
    %cst_30 = arith.constant 1.000000e+00 : f32
    %259 = vector.broadcast %cst_30 : f32 to vector<4x8xf32>
    %260 = arith.addf %259, %258 : vector<4x8xf32>
    %261 = arith.divf %259, %260 : vector<4x8xf32>
    %262 = vector.extract_strided_slice %249 {offsets = [0, 16], sizes = [4, 8], strides = [1, 1]} : vector<4x32xf32> to vector<4x8xf32>
    %263 = math.tanh %262 : vector<4x8xf32>
    %264 = vector.extract_strided_slice %249 {offsets = [0, 24], sizes = [4, 8], strides = [1, 1]} : vector<4x32xf32> to vector<4x8xf32>
    %265 = arith.negf %264 : vector<4x8xf32>
    %266 = math.exp %265 : vector<4x8xf32>
    %cst_31 = arith.constant 1.000000e+00 : f32
    %267 = vector.broadcast %cst_31 : f32 to vector<4x8xf32>
    %268 = arith.addf %267, %266 : vector<4x8xf32>
    %269 = arith.divf %267, %268 : vector<4x8xf32>
    %270 = arith.mulf %261, %244 : vector<4x8xf32>
    %271 = arith.mulf %255, %263 : vector<4x8xf32>
    %272 = arith.addf %270, %271 : vector<4x8xf32>
    %273 = math.tanh %272 : vector<4x8xf32>
    %274 = arith.mulf %269, %273 : vector<4x8xf32>
    %275 = vector.extract_strided_slice %274 {offsets = [0, 0], sizes = [2, 8], strides = [1, 1]} : vector<4x8xf32> to vector<2x8xf32>
    %276 = vector.extract_strided_slice %274 {offsets = [2, 0], sizes = [2, 8], strides = [1, 1]} : vector<4x8xf32> to vector<2x8xf32>
    %cst_32 = arith.constant dense<0.000000e+00> : vector<4x64xf32>
    %277 = tpu.matmul %274, %230, %cst_32 {dimension_numbers = #tpu.dot_dimension_numbers<[1], [0], [0], [1], [0, 0, 1, 1], [], []>} : vector<4x8xf32>, vector<8x64xf32>, vector<4x64xf32> -> vector<4x64xf32>
    %278 = arith.addf %239, %277 : vector<4x64xf32>
    %279 = vector.extract_strided_slice %278 {offsets = [0, 0], sizes = [4, 32], strides = [1, 1]} : vector<4x64xf32> to vector<4x32xf32>
    %280 = vector.extract_strided_slice %278 {offsets = [0, 32], sizes = [4, 32], strides = [1, 1]} : vector<4x64xf32> to vector<4x32xf32>
    %281 = arith.select %242, %279, %280 : vector<4x32xi1>, vector<4x32xf32>
    %282 = vector.extract_strided_slice %281 {offsets = [0, 0], sizes = [4, 8], strides = [1, 1]} : vector<4x32xf32> to vector<4x8xf32>
    %283 = arith.negf %282 : vector<4x8xf32>
    %284 = math.exp %283 : vector<4x8xf32>
    %cst_33 = arith.constant 1.000000e+00 : f32
    %285 = vector.broadcast %cst_33 : f32 to vector<4x8xf32>
    %286 = arith.addf %285, %284 : vector<4x8xf32>
    %287 = arith.divf %285, %286 : vector<4x8xf32>
    %288 = vector.extract_strided_slice %281 {offsets = [0, 8], sizes = [4, 8], strides = [1, 1]} : vector<4x32xf32> to vector<4x8xf32>
    %289 = arith.negf %288 : vector<4x8xf32>
    %290 = math.exp %289 : vector<4x8xf32>
    %cst_34 = arith.constant 1.000000e+00 : f32
    %291 = vector.broadcast %cst_34 : f32 to vector<4x8xf32>
    %292 = arith.addf %291, %290 : vector<4x8xf32>
    %293 = arith.divf %291, %292 : vector<4x8xf32>
    %294 = vector.extract_strided_slice %281 {offsets = [0, 16], sizes = [4, 8], strides = [1, 1]} : vector<4x32xf32> to vector<4x8xf32>
    %295 = math.tanh %294 : vector<4x8xf32>
    %296 = vector.extract_strided_slice %281 {offsets = [0, 24], sizes = [4, 8], strides = [1, 1]} : vector<4x32xf32> to vector<4x8xf32>
    %297 = arith.negf %296 : vector<4x8xf32>
    %298 = math.exp %297 : vector<4x8xf32>
    %cst_35 = arith.constant 1.000000e+00 : f32
    %299 = vector.broadcast %cst_35 : f32 to vector<4x8xf32>
    %300 = arith.addf %299, %298 : vector<4x8xf32>
    %301 = arith.divf %299, %300 : vector<4x8xf32>
    %302 = arith.mulf %293, %272 : vector<4x8xf32>
    %303 = arith.mulf %287, %295 : vector<4x8xf32>
    %304 = arith.addf %302, %303 : vector<4x8xf32>
    %305 = math.tanh %304 : vector<4x8xf32>
    %306 = arith.mulf %301, %305 : vector<4x8xf32>
    %307 = vector.extract_strided_slice %306 {offsets = [0, 0], sizes = [2, 8], strides = [1, 1]} : vector<4x8xf32> to vector<2x8xf32>
    %308 = vector.extract_strided_slice %306 {offsets = [2, 0], sizes = [2, 8], strides = [1, 1]} : vector<4x8xf32> to vector<2x8xf32>
    %309 = tpu.concatenate %275, %307 in 0 : vector<2x8xf32>, vector<2x8xf32> -> vector<4x8xf32>
    %310 = tpu.concatenate %308, %276 in 0 : vector<2x8xf32>, vector<2x8xf32> -> vector<4x8xf32>
    %311 = tpu.concatenate %309, %310 in 1 : vector<4x8xf32>, vector<4x8xf32> -> vector<4x16xf32>
    %312 = vector.extract_strided_slice %0 {offsets = [112, 0], sizes = [16, 8], strides = [1, 1]} : vector<159x64xf32> to vector<16x8xf32>
    %313 = vector.extract_strided_slice %0 {offsets = [128, 0], sizes = [1, 8], strides = [1, 1]} : vector<159x64xf32> to vector<1x8xf32>
    %314 = vector.extract_strided_slice %0 {offsets = [129, 0], sizes = [8, 1], strides = [1, 1]} : vector<159x64xf32> to vector<8x1xf32>
    %315 = vector.extract_strided_slice %0 {offsets = [137, 0], sizes = [1, 1], strides = [1, 1]} : vector<159x64xf32> to vector<1x1xf32>
    %cst_36 = arith.constant dense<0.000000e+00> : vector<4x8xf32>
    %316 = tpu.matmul %311, %312, %cst_36 {dimension_numbers = #tpu.dot_dimension_numbers<[1], [0], [0], [1], [0, 0, 1, 1], [], []>} : vector<4x16xf32>, vector<16x8xf32>, vector<4x8xf32> -> vector<4x8xf32>
    %317 = vector.broadcast %313 : vector<1x8xf32> to vector<4x8xf32>
    %318 = arith.addf %316, %317 : vector<4x8xf32>
    %319 = math.tanh %318 : vector<4x8xf32>
    %cst_37 = arith.constant dense<0.000000e+00> : vector<4x1xf32>
    %320 = tpu.matmul %319, %314, %cst_37 {dimension_numbers = #tpu.dot_dimension_numbers<[1], [0], [0], [1], [0, 0, 1, 1], [], []>} : vector<4x8xf32>, vector<8x1xf32>, vector<4x1xf32> -> vector<4x1xf32>
    %321 = vector.broadcast %315 : vector<1x1xf32> to vector<4x1xf32>
    %322 = arith.addf %320, %321 : vector<4x1xf32>
    %323 = vector.extract_strided_slice %322 {offsets = [0, 0], sizes = [2, 1], strides = [1, 1]} : vector<4x1xf32> to vector<2x1xf32>
    %324 = vector.extract_strided_slice %322 {offsets = [2, 0], sizes = [2, 1], strides = [1, 1]} : vector<4x1xf32> to vector<2x1xf32>
    %325 = arith.maximumf %323, %324 : vector<2x1xf32>
    %326 = arith.subf %323, %325 : vector<2x1xf32>
    %327 = math.exp %326 : vector<2x1xf32>
    %328 = arith.subf %324, %325 : vector<2x1xf32>
    %329 = math.exp %328 : vector<2x1xf32>
    %330 = arith.addf %327, %329 : vector<2x1xf32>
    %331 = tpu.reciprocal %330 {approx = true} : vector<2x1xf32> -> vector<2x1xf32>
    %332 = arith.mulf %327, %331 : vector<2x1xf32>
    %333 = vector.extract_strided_slice %311 {offsets = [0, 0], sizes = [2, 16], strides = [1, 1]} : vector<4x16xf32> to vector<2x16xf32>
    %334 = vector.broadcast %332 : vector<2x1xf32> to vector<2x16xf32>
    %335 = arith.mulf %334, %333 : vector<2x16xf32>
    %336 = arith.mulf %329, %331 : vector<2x1xf32>
    %337 = vector.extract_strided_slice %311 {offsets = [2, 0], sizes = [2, 16], strides = [1, 1]} : vector<4x16xf32> to vector<2x16xf32>
    %338 = vector.broadcast %336 : vector<2x1xf32> to vector<2x16xf32>
    %339 = arith.mulf %338, %337 : vector<2x16xf32>
    %340 = arith.addf %335, %339 : vector<2x16xf32>
    %341 = vector.extract_strided_slice %0 {offsets = [138, 0], sizes = [4, 16], strides = [1, 1]} : vector<159x64xf32> to vector<4x16xf32>
    %342 = vector.extract_strided_slice %341 {offsets = [0, 0], sizes = [1, 16], strides = [1, 1]} : vector<4x16xf32> to vector<1x16xf32>
    %343 = vector.extract_strided_slice %341 {offsets = [1, 0], sizes = [1, 16], strides = [1, 1]} : vector<4x16xf32> to vector<1x16xf32>
    %344 = vector.extract_strided_slice %341 {offsets = [2, 0], sizes = [1, 16], strides = [1, 1]} : vector<4x16xf32> to vector<1x16xf32>
    %345 = vector.extract_strided_slice %341 {offsets = [3, 0], sizes = [1, 16], strides = [1, 1]} : vector<4x16xf32> to vector<1x16xf32>
    %346 = vector.broadcast %344 : vector<1x16xf32> to vector<2x16xf32>
    %347 = arith.subf %340, %346 : vector<2x16xf32>
    %cst_38 = arith.constant 9.99999974E-6 : f32
    %348 = vector.broadcast %cst_38 : f32 to vector<1x16xf32>
    %349 = arith.addf %345, %348 : vector<1x16xf32>
    %350 = math.rsqrt %349 : vector<1x16xf32>
    %351 = vector.broadcast %350 : vector<1x16xf32> to vector<2x16xf32>
    %352 = arith.mulf %347, %351 : vector<2x16xf32>
    %353 = vector.broadcast %342 : vector<1x16xf32> to vector<2x16xf32>
    %354 = arith.mulf %352, %353 : vector<2x16xf32>
    %355 = vector.broadcast %343 : vector<1x16xf32> to vector<2x16xf32>
    %356 = arith.addf %354, %355 : vector<2x16xf32>
    %357 = vector.extract_strided_slice %0 {offsets = [142, 0], sizes = [16, 4], strides = [1, 1]} : vector<159x64xf32> to vector<16x4xf32>
    %cst_39 = arith.constant dense<0.000000e+00> : vector<2x4xf32>
    %358 = tpu.matmul %356, %357, %cst_39 {dimension_numbers = #tpu.dot_dimension_numbers<[1], [0], [0], [1], [0, 0, 1, 1], [], []>} : vector<2x16xf32>, vector<16x4xf32>, vector<2x4xf32> -> vector<2x4xf32>
    %359 = vector.extract_strided_slice %0 {offsets = [158, 0], sizes = [1, 4], strides = [1, 1]} : vector<159x64xf32> to vector<1x4xf32>
    %360 = vector.broadcast %359 : vector<1x4xf32> to vector<2x4xf32>
    %361 = arith.addf %358, %360 : vector<2x4xf32>
    %c0_40 = arith.constant 0 : index
    %c0_41 = arith.constant 0 : index
    %362 = vector.load %arg2[%c0_40, %c0_41] : memref<2x4xf32, #tpu.memory_space<vmem>>, vector<2x4xf32>
    tpu.vector_store %arg2[%c0_40, %c0_41], %361 {strides = array<i32>} : memref<2x4xf32, #tpu.memory_space<vmem>>, vector<2x4xf32>,
    return
  }
}

</mosaic_0001>

<llo_original>
// kernel: han_forward.1
$region0: #{han_forward.1}
  #allocation0 [shape = 'u32[]', space=smem, size = 0x4, offset = 0x4, fixed_abs, tag = 'smem constant byte address 0x4 - core index']
  #allocation1 [shape = 'u32[144,128]{1,0:T(1,128)}', space=vmem, size = 0x12000, scoped, tag = 'internal scratch']
  %s0 = inlined_call_operand.vmem [shape: s32[16,1], index: 0, kind: input, shape index: {}]
  %s1 = inlined_call_operand.vmem [shape: f32[159,64], index: 1, kind: input, shape index: {}]
  %s2 = inlined_call_operand.hbm [shape: f32[2,4], index: 2, kind: output, shape index: {}]
  %s3 = sld [smem:[#allocation0]]
  $region18: #{han_forward.1} parent=0
    _
  %s5 = ssub.s32 1, %s3
  %s6 = scalar_select 0, %s5, %s3
  $region1: #{han_forward.1} parent=0
    #allocation2 [shape = 'u8[1024]{0}', space=vmem, size = 0x400, scoped, tag = 'output window, operand 0, single buffered']
    #allocation3 [shape = 's32[1]{0}', space=sflag, size = 0x4, scoped, tag = 'scoped memory for han_forward.1']
    %7 = vsyncpa [#allocation3], 0
    // Predicated region
    $region2: #{han_forward.1} parent=1 // pred_check
      _
    $region3: #{han_forward.1} parent=1 // pred_check_branch
      %9 = sbr.rel (0) target = $region5
    $region4: #{han_forward.1} parent=1 // pred_region
      _
    $region5: #{han_forward.1} parent=1 // pred_fallthru
      _
    // Predicated region
    $region6: #{han_forward.1} parent=1 // pred_check
      _
    $region7: #{han_forward.1} parent=1 // pred_check_branch
      %11 = sbr.rel (0) target = $region9
    $region8: #{han_forward.1} parent=1 // pred_region
      _
    $region9: #{han_forward.1} parent=1 // pred_fallthru
      _
    %v12 = vld [vmem:[%s1] sm:$0xff]
    %v13 = vld [vmem:[%s1 + $0x8] sm:$0xff]
    %v14 = vld [vmem:[%s1 + $0x10] sm:$0xff]
    %v15 = vld [vmem:[%s1 + $0x18] sm:$0xff]
    %v16 = vld [vmem:[%s1 + $0x20] sm:$0xff]
    %v17 = vld [vmem:[%s1 + $0x28] sm:$0xff]
    %v18 = vld [vmem:[%s1 + $0x30] sm:$0xff]
    %v19 = vld [vmem:[%s1 + $0x38] sm:$0xff]
    %v20 = vld [vmem:[%s1 + $0x40] sm:$0xff]
    %v21 = vld [vmem:[%s1 + $0x48] sm:$0xff]
    %v22 = vld [vmem:[%s1 + $0x50] sm:$0xff]
    %v23 = vld [vmem:[%s1 + $0x58] sm:$0xff]
    %v24 = vld [vmem:[%s1 + $0x60] sm:$0xff]
    %v25 = vld [vmem:[%s1 + $0x68] sm:$0xff]
    %v26 = vld [vmem:[%s1 + $0x70] sm:$0xff]
    %v27 = vld [vmem:[%s1 + $0x78] sm:$0xff]
    %v28 = vld [vmem:[%s1 + $0x80] sm:$0xff]
    %v29 = vld [vmem:[%s1 + $0x88] sm:$0xff]
    %v30 = vld [vmem:[%s1 + $0x90] sm:$0xff]
    %v31 = vld [vmem:[%s1 + $0x98] sm:$0x7f]
    %v32 = vld [vmem:[%s0] sm:$0xff]
    %v33 = vld [vmem:[%s0 + $0x8] sm:$0xff]
    %v34 = vlaneseq
    %v35 = vand.u32 %v34, 127
    %36 = vset.pattern.permute.xlu0 0
    %37 = vperm.xlu0 %36, %v32
    %v38 = vpop.permute.xlu0 %37
    %39 = vset.pattern.permute.xlu0 0
    %40 = vperm.xlu0 %39, %v33
    %v41 = vpop.permute.xlu0 %40
    %vm42 = vcmp.eq.s32.totalorder %v38, %v35
    %vm43 = vcmp.eq.s32.totalorder %v41, %v35
    %v44 = vsel %vm42, 1, 0
    %v45 = vsel %vm43, 1, 0
    %v46 = vcvt.s32.f32 %v44
    %v47 = vcvt.s32.f32 %v45
    %vm48 = vcmask 261120
    %v50 = vsel %vm48, %v46, 0
    %v53 = vsel %vm48, %v47, 0
    %55 = vmatprep.subr.mxu0 0.0
    %56 = vmatpush1.msra.mxu0 %v12
    %57 = vmatprep.subr.mxu0 0.0
    %58 = vmatpush1.msra.mxu0 %v13
    %59 = vmatprep.subr.mxu0 0.0
    %60 = vmatpush1.msra.mxu0 %v14
    %61 = vmatprep.subr.mxu0 0.0
    %62 = vmatpush1.msra.mxu0 %v15
    %63 = vmatprep.subr.mxu0 0.0
    %64 = vmatpush1.msra.mxu0 0.0
    %65 = vmatprep.subr.mxu0 0.0
    %66 = vmatpush1.msra.mxu0 0.0
    %67 = vmatprep.subr.mxu0 0.0
    %68 = vmatpush1.msra.mxu0 0.0
    %69 = vmatprep.subr.mxu0 0.0
    %70 = vmatpush1.msra.mxu0 0.0
    %71 = vmatprep.subr.mxu0 0.0
    %72 = vmatpush1.msra.mxu0 0.0
    %73 = vmatprep.subr.mxu0 0.0
    %74 = vmatpush1.msra.mxu0 0.0
    %75 = vmatprep.subr.mxu0 0.0
    %76 = vmatpush1.msra.mxu0 0.0
    %77 = vmatprep.subr.mxu0 0.0
    %78 = vmatpush1.msra.mxu0 0.0
    %79 = vmatprep.subr.mxu0 0.0
    %80 = vmatpush1.msra.mxu0 0.0
    %81 = vmatprep.subr.mxu0 0.0
    %82 = vmatpush1.msra.mxu0 0.0
    %83 = vmatprep.subr.mxu0 0.0
    %84 = vmatpush1.msra.mxu0 0.0
    %85 = vmatprep.subr.mxu0 0.0
    %86 = vmatpush1.msra.mxu0 0.0
    %87 = vmatprep.subr.mxu0 0.0
    %88 = vmatpush1.msra.mxu0 0.0
    %89 = vmatprep.subr.mxu0 0.0
    %90 = vmatpush1.msra.mxu0 0.0
    %91 = vmatprep.subr.mxu0 0.0
    %92 = vmatpush1.msra.mxu0 0.0
    %93 = vmatprep.subr.mxu0 0.0
    %94 = vmatpush1.msra.mxu0 0.0
    %95 = vmatprep.subr.mxu0 0.0
    %96 = vmatpush1.msra.mxu0 0.0
    %97 = vmatprep.subr.mxu0 0.0
    %98 = vmatpush1.msra.mxu0 0.0
    %99 = vmatprep.subr.mxu0 0.0
    %100 = vmatpush1.msra.mxu0 0.0
    %101 = vmatprep.subr.mxu0 0.0
    %102 = vmatpush1.msra.mxu0 0.0
    %103 = vmatprep.subr.mxu0 0.0
    %104 = vmatpush1.msra.mxu0 0.0
    %105 = vmatprep.subr.mxu0 0.0
    %106 = vmatpush1.msra.mxu0 0.0
    %107 = vmatprep.subr.mxu0 0.0
    %108 = vmatpush1.msra.mxu0 0.0
    %109 = vmatprep.subr.mxu0 0.0
    %110 = vmatpush1.msra.mxu0 0.0
    %111 = vmatprep.subr.mxu0 0.0
    %112 = vmatpush1.msra.mxu0 0.0
    %113 = vmatprep.subr.mxu0 0.0
    %114 = vmatpush1.msra.mxu0 0.0
    %115 = vmatprep.subr.mxu0 0.0
    %116 = vmatpush1.msra.mxu0 0.0
    %117 = vmatprep.subr.mxu0 0.0
    %118 = vmatpush1.msra.mxu0 0.0
    %119 = vmatprep.mubr.f32.mxu0 0.0
    %120 = vmatmul.mubr.f32.gmra.mrb[0].mxu0 %v50
    %v121 = vpop.f32.mrb[0].mxu0
    %v122 = vadd.f32 0.0, %v121
    %v123 = vpop.f32.mrb[0].mxu0
    %124 = vmatprep.mubr.f32.mxu0 0.0
    %125 = vmatmul.mubr.f32.gmra.mrb[0].mxu0 %v53
    %v126 = vpop.f32.mrb[0].mxu0
    %v127 = vadd.f32 0.0, %v126
    %v128 = vpop.f32.mrb[0].mxu0
    %129 = vdwg.mxu0
    %v130 = vlaneseq
    %v131 = vshrl.u32 %v130, 7
    %v132 = vsub.s32 0, %v131
    %v133 = vrot.slane %v19, %v132
    %vm134 = vcmask 130048
    %v136 = vsel %vm134, %v122, 0
    %v139 = vsel %vm134, %v127, 0
    %141 = vmatprep.subr.mxu0 0.0
    %142 = vmatpush1.msra.mxu0 %v16
    %143 = vmatprep.subr.mxu0 0.0
    %144 = vmatpush1.msra.mxu0 %v17
    %145 = vmatprep.subr.mxu0 0.0
    %146 = vmatpush1.msra.mxu0 0.0
    %147 = vmatprep.subr.mxu0 0.0
    %148 = vmatpush1.msra.mxu0 0.0
    %149 = vmatprep.subr.mxu0 0.0
    %150 = vmatpush1.msra.mxu0 0.0
    %151 = vmatprep.subr.mxu0 0.0
    %152 = vmatpush1.msra.mxu0 0.0
    %153 = vmatprep.subr.mxu0 0.0
    %154 = vmatpush1.msra.mxu0 0.0
    %155 = vmatprep.subr.mxu0 0.0
    %156 = vmatpush1.msra.mxu0 0.0
    %157 = vmatprep.subr.mxu0 0.0
    %158 = vmatpush1.msra.mxu0 0.0
    %159 = vmatprep.subr.mxu0 0.0
    %160 = vmatpush1.msra.mxu0 0.0
    %161 = vmatprep.subr.mxu0 0.0
    %162 = vmatpush1.msra.mxu0 0.0
    %163 = vmatprep.subr.mxu0 0.0
    %164 = vmatpush1.msra.mxu0 0.0
    %165 = vmatprep.subr.mxu0 0.0
    %166 = vmatpush1.msra.mxu0 0.0
    %167 = vmatprep.subr.mxu0 0.0
    %168 = vmatpush1.msra.mxu0 0.0
    %169 = vmatprep.subr.mxu0 0.0
    %170 = vmatpush1.msra.mxu0 0.0
    %171 = vmatprep.subr.mxu0 0.0
    %172 = vmatpush1.msra.mxu0 0.0
    %173 = vmatprep.subr.mxu0 0.0
    %174 = vmatpush1.msra.mxu0 0.0
    %175 = vmatprep.subr.mxu0 0.0
    %176 = vmatpush1.msra.mxu0 0.0
    %177 = vmatprep.subr.mxu0 0.0
    %178 = vmatpush1.msra.mxu0 0.0
    %179 = vmatprep.subr.mxu0 0.0
    %180 = vmatpush1.msra.mxu0 0.0
    %181 = vmatprep.subr.mxu0 0.0
    %182 = vmatpush1.msra.mxu0 0.0
    %183 = vmatprep.subr.mxu0 0.0
    %184 = vmatpush1.msra.mxu0 0.0
    %185 = vmatprep.subr.mxu0 0.0
    %186 = vmatpush1.msra.mxu0 0.0
    %187 = vmatprep.subr.mxu0 0.0
    %188 = vmatpush1.msra.mxu0 0.0
    %189 = vmatprep.subr.mxu0 0.0
    %190 = vmatpush1.msra.mxu0 0.0
    %191 = vmatprep.subr.mxu0 0.0
    %192 = vmatpush1.msra.mxu0 0.0
    %193 = vmatprep.subr.mxu0 0.0
    %194 = vmatpush1.msra.mxu0 0.0
    %195 = vmatprep.subr.mxu0 0.0
    %196 = vmatpush1.msra.mxu0 0.0
    %197 = vmatprep.subr.mxu0 0.0
    %198 = vmatpush1.msra.mxu0 0.0
    %199 = vmatprep.subr.mxu0 0.0
    %200 = vmatpush1.msra.mxu0 0.0
    %201 = vmatprep.subr.mxu0 0.0
    %202 = vmatpush1.msra.mxu0 0.0
    %203 = vmatprep.subr.mxu0 0.0
    %204 = vmatpush1.msra.mxu0 0.0
    %205 = vmatprep.mubr.f32.mxu0 0.0
    %206 = vmatmul.mubr.f32.gmra.mrb[0].mxu0 %v136
    %v207 = vpop.f32.mrb[0].mxu0
    %v208 = vadd.f32 %v133, %v207
    %v209 = vpop.f32.mrb[0].mxu0
    %210 = vmatprep.mubr.f32.mxu0 0.0
    %211 = vmatmul.mubr.f32.gmra.mrb[0].mxu0 %v139
    %v212 = vpop.f32.mrb[0].mxu0
    %v213 = vadd.f32 %v133, %v212
    %v214 = vpop.f32.mrb[0].mxu0
    %215 = vdwg.mxu0
    %vm216 = vcmask 1043456
    %v217 = vsel %vm216, %v208, %v213
    %v219 = vrot.slane %v208, 4
    %v222 = vrot.slane %v213, 4
    %v224 = vsel %vm216, %v219, %v222
    %v225 = vsel %vm216, %v213, %v208
    %v226 = vsel %vm216, %v222, %v219
    %v227 = vlaneseq
    %v228 = vshrl.u32 %v227, 7
    %vm229 = vcmp.lt.s32.totalorder %v228, 4
    %vm230 = vcmask 64512
    %v232 = vsel %vm230, 0.0, 0
    %234 = vmatprep.subr.mxu0 0.0
    %235 = vmatpush1.msra.mxu0 %v18
    %236 = vmatprep.subr.mxu0 0.0
    %237 = vmatpush1.msra.mxu0 0.0
    %238 = vmatprep.subr.mxu0 0.0
    %239 = vmatpush1.msra.mxu0 0.0
    %240 = vmatprep.subr.mxu0 0.0
    %241 = vmatpush1.msra.mxu0 0.0
    %242 = vmatprep.subr.mxu0 0.0
    %243 = vmatpush1.msra.mxu0 0.0
    %244 = vmatprep.subr.mxu0 0.0
    %245 = vmatpush1.msra.mxu0 0.0
    %246 = vmatprep.subr.mxu0 0.0
    %247 = vmatpush1.msra.mxu0 0.0
    %248 = vmatprep.subr.mxu0 0.0
    %249 = vmatpush1.msra.mxu0 0.0
    %250 = vmatprep.subr.mxu0 0.0
    %251 = vmatpush1.msra.mxu0 0.0
    %252 = vmatprep.subr.mxu0 0.0
    %253 = vmatpush1.msra.mxu0 0.0
    %254 = vmatprep.subr.mxu0 0.0
    %255 = vmatpush1.msra.mxu0 0.0
    %256 = vmatprep.subr.mxu0 0.0
    %257 = vmatpush1.msra.mxu0 0.0
    %258 = vmatprep.subr.mxu0 0.0
    %259 = vmatpush1.msra.mxu0 0.0
    %260 = vmatprep.subr.mxu0 0.0
    %261 = vmatpush1.msra.mxu0 0.0
    %262 = vmatprep.subr.mxu0 0.0
    %263 = vmatpush1.msra.mxu0 0.0
    %264 = vmatprep.subr.mxu0 0.0
    %265 = vmatpush1.msra.mxu0 0.0
    %266 = vmatprep.subr.mxu0 0.0
    %267 = vmatpush1.msra.mxu0 0.0
    %268 = vmatprep.subr.mxu0 0.0
    %269 = vmatpush1.msra.mxu0 0.0
    %270 = vmatprep.subr.mxu0 0.0
    %271 = vmatpush1.msra.mxu0 0.0
    %272 = vmatprep.subr.mxu0 0.0
    %273 = vmatpush1.msra.mxu0 0.0
    %274 = vmatprep.subr.mxu0 0.0
    %275 = vmatpush1.msra.mxu0 0.0
    %276 = vmatprep.subr.mxu0 0.0
    %277 = vmatpush1.msra.mxu0 0.0
    %278 = vmatprep.subr.mxu0 0.0
    %279 = vmatpush1.msra.mxu0 0.0
    %280 = vmatprep.subr.mxu0 0.0
    %281 = vmatpush1.msra.mxu0 0.0
    %282 = vmatprep.subr.mxu0 0.0
    %283 = vmatpush1.msra.mxu0 0.0
    %284 = vmatprep.subr.mxu0 0.0
    %285 = vmatpush1.msra.mxu0 0.0
    %286 = vmatprep.subr.mxu0 0.0
    %287 = vmatpush1.msra.mxu0 0.0
    %288 = vmatprep.subr.mxu0 0.0
    %289 = vmatpush1.msra.mxu0 0.0
    %290 = vmatprep.subr.mxu0 0.0
    %291 = vmatpush1.msra.mxu0 0.0
    %292 = vmatprep.subr.mxu0 0.0
    %293 = vmatpush1.msra.mxu0 0.0
    %294 = vmatprep.subr.mxu0 0.0
    %295 = vmatpush1.msra.mxu0 0.0
    %296 = vmatprep.subr.mxu0 0.0
    %297 = vmatpush1.msra.mxu0 0.0
    %298 = vmatprep.mubr.f32.mxu0 0.0
    %299 = vmatmul.mubr.f32.gmra.mrb[0].mxu0 %v232
    %v300 = vpop.f32.mrb[0].mxu0
    %v301 = vadd.f32 0.0, %v300
    %v302 = vpop.f32.mrb[0].mxu0
    %303 = vdwg.mxu0
    %v304 = vadd.f32 %v217, %v301
    %306 = vrot.lane.b32.xlu0 %v304, 96
    %v307 = vpop.permute.xlu0 %306
    %v309 = vsel %vm229, %v304, %v307
    %v310 = vxor.u32 %v309, 2147483648
    %v311 = vmul.f32 %v310, 1.442695
    %v312 = vpow.pop %v311
    %v313 = vadd.f32 %v312, 1.0
    %v314 = vrcp.pop %v313
    %v315 = vmul.f32 1.0, %v314
    %v316 = vtanh.pop %v309
    %v317 = vmul.f32 %v315, 0.0
    %319 = vrot.lane.b32.xlu0 %v316, 112
    %v320 = vpop.permute.xlu0 %319
    %v322 = vmul.f32 %v315, %v320
    %324 = vrot.lane.b32.xlu0 %v322, 8
    %v325 = vpop.permute.xlu0 %324
    %v327 = vadd.f32 %v317, %v325
    %v328 = vtanh.pop %v327
    %330 = vrot.lane.b32.xlu0 %v328, 16
    %v331 = vpop.permute.xlu0 %330
    %v333 = vmul.f32 %v315, %v331
    %335 = vrot.lane.b32.xlu0 %v333, 104
    %v336 = vpop.permute.xlu0 %335
    %v337 = vsel %vm230, %v336, 0
    %339 = vmatprep.subr.mxu0 0.0
    %340 = vmatpush1.msra.mxu0 %v18
    %341 = vmatprep.subr.mxu0 0.0
    %342 = vmatpush1.msra.mxu0 0.0
    %343 = vmatprep.subr.mxu0 0.0
    %344 = vmatpush1.msra.mxu0 0.0
    %345 = vmatprep.subr.mxu0 0.0
    %346 = vmatpush1.msra.mxu0 0.0
    %347 = vmatprep.subr.mxu0 0.0
    %348 = vmatpush1.msra.mxu0 0.0
    %349 = vmatprep.subr.mxu0 0.0
    %350 = vmatpush1.msra.mxu0 0.0
    %351 = vmatprep.subr.mxu0 0.0
    %352 = vmatpush1.msra.mxu0 0.0
    %353 = vmatprep.subr.mxu0 0.0
    %354 = vmatpush1.msra.mxu0 0.0
    %355 = vmatprep.subr.mxu0 0.0
    %356 = vmatpush1.msra.mxu0 0.0
    %357 = vmatprep.subr.mxu0 0.0
    %358 = vmatpush1.msra.mxu0 0.0
    %359 = vmatprep.subr.mxu0 0.0
    %360 = vmatpush1.msra.mxu0 0.0
    %361 = vmatprep.subr.mxu0 0.0
    %362 = vmatpush1.msra.mxu0 0.0
    %363 = vmatprep.subr.mxu0 0.0
    %364 = vmatpush1.msra.mxu0 0.0
    %365 = vmatprep.subr.mxu0 0.0
    %366 = vmatpush1.msra.mxu0 0.0
    %367 = vmatprep.subr.mxu0 0.0
    %368 = vmatpush1.msra.mxu0 0.0
    %369 = vmatprep.subr.mxu0 0.0
    %370 = vmatpush1.msra.mxu0 0.0
    %371 = vmatprep.subr.mxu0 0.0
    %372 = vmatpush1.msra.mxu0 0.0
    %373 = vmatprep.subr.mxu0 0.0
    %374 = vmatpush1.msra.mxu0 0.0
    %375 = vmatprep.subr.mxu0 0.0
    %376 = vmatpush1.msra.mxu0 0.0
    %377 = vmatprep.subr.mxu0 0.0
    %378 = vmatpush1.msra.mxu0 0.0
    %379 = vmatprep.subr.mxu0 0.0
    %380 = vmatpush1.msra.mxu0 0.0
    %381 = vmatprep.subr.mxu0 0.0
    %382 = vmatpush1.msra.mxu0 0.0
    %383 = vmatprep.subr.mxu0 0.0
    %384 = vmatpush1.msra.mxu0 0.0
    %385 = vmatprep.subr.mxu0 0.0
    %386 = vmatpush1.msra.mxu0 0.0
    %387 = vmatprep.subr.mxu0 0.0
    %388 = vmatpush1.msra.mxu0 0.0
    %389 = vmatprep.subr.mxu0 0.0
    %390 = vmatpush1.msra.mxu0 0.0
    %391 = vmatprep.subr.mxu0 0.0
    %392 = vmatpush1.msra.mxu0 0.0
    %393 = vmatprep.subr.mxu0 0.0
    %394 = vmatpush1.msra.mxu0 0.0
    %395 = vmatprep.subr.mxu0 0.0
    %396 = vmatpush1.msra.mxu0 0.0
    %397 = vmatprep.subr.mxu0 0.0
    %398 = vmatpush1.msra.mxu0 0.0
    %399 = vmatprep.subr.mxu0 0.0
    %400 = vmatpush1.msra.mxu0 0.0
    %401 = vmatprep.subr.mxu0 0.0
    %402 = vmatpush1.msra.mxu0 0.0
    %403 = vmatprep.mubr.f32.mxu0 0.0
    %404 = vmatmul.mubr.f32.gmra.mrb[0].mxu0 %v337
    %v405 = vpop.f32.mrb[0].mxu0
    %v406 = vadd.f32 0.0, %v405
    %v407 = vpop.f32.mrb[0].mxu0
    %408 = vdwg.mxu0
    %v409 = vadd.f32 %v224, %v406
    %411 = vrot.lane.b32.xlu0 %v409, 96
    %v412 = vpop.permute.xlu0 %411
    %v414 = vsel %vm229, %v409, %v412
    %v415 = vxor.u32 %v414, 2147483648
    %v416 = vmul.f32 %v415, 1.442695
    %v417 = vpow.pop %v416
    %v418 = vadd.f32 %v417, 1.0
    %v419 = vrcp.pop %v418
    %v420 = vmul.f32 1.0, %v419
    %v421 = vtanh.pop %v414
    %v422 = vmul.f32 %v420, %v327
    %424 = vrot.lane.b32.xlu0 %v421, 112
    %v425 = vpop.permute.xlu0 %424
    %v427 = vmul.f32 %v420, %v425
    %429 = vrot.lane.b32.xlu0 %v427, 8
    %v430 = vpop.permute.xlu0 %429
    %v432 = vadd.f32 %v422, %v430
    %v433 = vtanh.pop %v432
    %435 = vrot.lane.b32.xlu0 %v433, 16
    %v436 = vpop.permute.xlu0 %435
    %v438 = vmul.f32 %v420, %v436
    %440 = vrot.lane.b32.xlu0 %v438, 104
    %v441 = vpop.permute.xlu0 %440
    %v442 = vsel %vm230, %v441, 0
    %444 = vmatprep.subr.mxu0 0.0
    %445 = vmatpush1.msra.mxu0 %v18
    %446 = vmatprep.subr.mxu0 0.0
    %447 = vmatpush1.msra.mxu0 0.0
    %448 = vmatprep.subr.mxu0 0.0
    %449 = vmatpush1.msra.mxu0 0.0
    %450 = vmatprep.subr.mxu0 0.0
    %451 = vmatpush1.msra.mxu0 0.0
    %452 = vmatprep.subr.mxu0 0.0
    %453 = vmatpush1.msra.mxu0 0.0
    %454 = vmatprep.subr.mxu0 0.0
    %455 = vmatpush1.msra.mxu0 0.0
    %456 = vmatprep.subr.mxu0 0.0
    %457 = vmatpush1.msra.mxu0 0.0
    %458 = vmatprep.subr.mxu0 0.0
    %459 = vmatpush1.msra.mxu0 0.0
    %460 = vmatprep.subr.mxu0 0.0
    %461 = vmatpush1.msra.mxu0 0.0
    %462 = vmatprep.subr.mxu0 0.0
    %463 = vmatpush1.msra.mxu0 0.0
    %464 = vmatprep.subr.mxu0 0.0
    %465 = vmatpush1.msra.mxu0 0.0
    %466 = vmatprep.subr.mxu0 0.0
    %467 = vmatpush1.msra.mxu0 0.0
    %468 = vmatprep.subr.mxu0 0.0
    %469 = vmatpush1.msra.mxu0 0.0
    %470 = vmatprep.subr.mxu0 0.0
    %471 = vmatpush1.msra.mxu0 0.0
    %472 = vmatprep.subr.mxu0 0.0
    %473 = vmatpush1.msra.mxu0 0.0
    %474 = vmatprep.subr.mxu0 0.0
    %475 = vmatpush1.msra.mxu0 0.0
    %476 = vmatprep.subr.mxu0 0.0
    %477 = vmatpush1.msra.mxu0 0.0
    %478 = vmatprep.subr.mxu0 0.0
    %479 = vmatpush1.msra.mxu0 0.0
    %480 = vmatprep.subr.mxu0 0.0
    %481 = vmatpush1.msra.mxu0 0.0
    %482 = vmatprep.subr.mxu0 0.0
    %483 = vmatpush1.msra.mxu0 0.0
    %484 = vmatprep.subr.mxu0 0.0
    %485 = vmatpush1.msra.mxu0 0.0
    %486 = vmatprep.subr.mxu0 0.0
    %487 = vmatpush1.msra.mxu0 0.0
    %488 = vmatprep.subr.mxu0 0.0
    %489 = vmatpush1.msra.mxu0 0.0
    %490 = vmatprep.subr.mxu0 0.0
    %491 = vmatpush1.msra.mxu0 0.0
    %492 = vmatprep.subr.mxu0 0.0
    %493 = vmatpush1.msra.mxu0 0.0
    %494 = vmatprep.subr.mxu0 0.0
    %495 = vmatpush1.msra.mxu0 0.0
    %496 = vmatprep.subr.mxu0 0.0
    %497 = vmatpush1.msra.mxu0 0.0
    %498 = vmatprep.subr.mxu0 0.0
    %499 = vmatpush1.msra.mxu0 0.0
    %500 = vmatprep.subr.mxu0 0.0
    %501 = vmatpush1.msra.mxu0 0.0
    %502 = vmatprep.subr.mxu0 0.0
    %503 = vmatpush1.msra.mxu0 0.0
    %504 = vmatprep.subr.mxu0 0.0
    %505 = vmatpush1.msra.mxu0 0.0
    %506 = vmatprep.subr.mxu0 0.0
    %507 = vmatpush1.msra.mxu0 0.0
    %508 = vmatprep.mubr.f32.mxu0 0.0
    %509 = vmatmul.mubr.f32.gmra.mrb[0].mxu0 %v442
    %v510 = vpop.f32.mrb[0].mxu0
    %v511 = vadd.f32 0.0, %v510
    %v512 = vpop.f32.mrb[0].mxu0
    %513 = vdwg.mxu0
    %v514 = vadd.f32 %v225, %v511
    %516 = vrot.lane.b32.xlu0 %v514, 96
    %v517 = vpop.permute.xlu0 %516
    %v519 = vsel %vm229, %v514, %v517
    %v520 = vxor.u32 %v519, 2147483648
    %v521 = vmul.f32 %v520, 1.442695
    %v522 = vpow.pop %v521
    %v523 = vadd.f32 %v522, 1.0
    %v524 = vrcp.pop %v523
    %v525 = vmul.f32 1.0, %v524
    %v526 = vtanh.pop %v519
    %v527 = vmul.f32 %v525, %v432
    %529 = vrot.lane.b32.xlu0 %v526, 112
    %v530 = vpop.permute.xlu0 %529
    %v532 = vmul.f32 %v525, %v530
    %534 = vrot.lane.b32.xlu0 %v532, 8
    %v535 = vpop.permute.xlu0 %534
    %v537 = vadd.f32 %v527, %v535
    %v538 = vtanh.pop %v537
    %540 = vrot.lane.b32.xlu0 %v538, 16
    %v541 = vpop.permute.xlu0 %540
    %v543 = vmul.f32 %v525, %v541
    %545 = vrot.lane.b32.xlu0 %v543, 104
    %v546 = vpop.permute.xlu0 %545
    %v547 = vsel %vm230, %v546, 0
    %549 = vmatprep.subr.mxu0 0.0
    %550 = vmatpush1.msra.mxu0 %v18
    %551 = vmatprep.subr.mxu0 0.0
    %552 = vmatpush1.msra.mxu0 0.0
    %553 = vmatprep.subr.mxu0 0.0
    %554 = vmatpush1.msra.mxu0 0.0
    %555 = vmatprep.subr.mxu0 0.0
    %556 = vmatpush1.msra.mxu0 0.0
    %557 = vmatprep.subr.mxu0 0.0
    %558 = vmatpush1.msra.mxu0 0.0
    %559 = vmatprep.subr.mxu0 0.0
    %560 = vmatpush1.msra.mxu0 0.0
    %561 = vmatprep.subr.mxu0 0.0
    %562 = vmatpush1.msra.mxu0 0.0
    %563 = vmatprep.subr.mxu0 0.0
    %564 = vmatpush1.msra.mxu0 0.0
    %565 = vmatprep.subr.mxu0 0.0
    %566 = vmatpush1.msra.mxu0 0.0
    %567 = vmatprep.subr.mxu0 0.0
    %568 = vmatpush1.msra.mxu0 0.0
    %569 = vmatprep.subr.mxu0 0.0
    %570 = vmatpush1.msra.mxu0 0.0
    %571 = vmatprep.subr.mxu0 0.0
    %572 = vmatpush1.msra.mxu0 0.0
    %573 = vmatprep.subr.mxu0 0.0
    %574 = vmatpush1.msra.mxu0 0.0
    %575 = vmatprep.subr.mxu0 0.0
    %576 = vmatpush1.msra.mxu0 0.0
    %577 = vmatprep.subr.mxu0 0.0
    %578 = vmatpush1.msra.mxu0 0.0
    %579 = vmatprep.subr.mxu0 0.0
    %580 = vmatpush1.msra.mxu0 0.0
    %581 = vmatprep.subr.mxu0 0.0
    %582 = vmatpush1.msra.mxu0 0.0
    %583 = vmatprep.subr.mxu0 0.0
    %584 = vmatpush1.msra.mxu0 0.0
    %585 = vmatprep.subr.mxu0 0.0
    %586 = vmatpush1.msra.mxu0 0.0
    %587 = vmatprep.subr.mxu0 0.0
    %588 = vmatpush1.msra.mxu0 0.0
    %589 = vmatprep.subr.mxu0 0.0
    %590 = vmatpush1.msra.mxu0 0.0
    %591 = vmatprep.subr.mxu0 0.0
    %592 = vmatpush1.msra.mxu0 0.0
    %593 = vmatprep.subr.mxu0 0.0
    %594 = vmatpush1.msra.mxu0 0.0
    %595 = vmatprep.subr.mxu0 0.0
    %596 = vmatpush1.msra.mxu0 0.0
    %597 = vmatprep.subr.mxu0 0.0
    %598 = vmatpush1.msra.mxu0 0.0
    %599 = vmatprep.subr.mxu0 0.0
    %600 = vmatpush1.msra.mxu0 0.0
    %601 = vmatprep.subr.mxu0 0.0
    %602 = vmatpush1.msra.mxu0 0.0
    %603 = vmatprep.subr.mxu0 0.0
    %604 = vmatpush1.msra.mxu0 0.0
    %605 = vmatprep.subr.mxu0 0.0
    %606 = vmatpush1.msra.mxu0 0.0
    %607 = vmatprep.subr.mxu0 0.0
    %608 = vmatpush1.msra.mxu0 0.0
    %609 = vmatprep.subr.mxu0 0.0
    %610 = vmatpush1.msra.mxu0 0.0
    %611 = vmatprep.subr.mxu0 0.0
    %612 = vmatpush1.msra.mxu0 0.0
    %613 = vmatprep.mubr.f32.mxu0 0.0
    %614 = vmatmul.mubr.f32.gmra.mrb[0].mxu0 %v547
    %v615 = vpop.f32.mrb[0].mxu0
    %v616 = vadd.f32 0.0, %v615
    %v617 = vpop.f32.mrb[0].mxu0
    %618 = vdwg.mxu0
    %v619 = vadd.f32 %v226, %v616
    %621 = vrot.lane.b32.xlu0 %v619, 96
    %v622 = vpop.permute.xlu0 %621
    %v624 = vsel %vm229, %v619, %v622
    %v625 = vxor.u32 %v624, 2147483648
    %v626 = vmul.f32 %v625, 1.442695
    %v627 = vpow.pop %v626
    %v628 = vadd.f32 %v627, 1.0
    %v629 = vrcp.pop %v628
    %v630 = vmul.f32 1.0, %v629
    %v631 = vtanh.pop %v624
    %v632 = vmul.f32 %v630, %v537
    %634 = vrot.lane.b32.xlu0 %v631, 112
    %v635 = vpop.permute.xlu0 %634
    %v637 = vmul.f32 %v630, %v635
    %639 = vrot.lane.b32.xlu0 %v637, 8
    %v640 = vpop.permute.xlu0 %639
    %v642 = vadd.f32 %v632, %v640
    %v643 = vtanh.pop %v642
    %645 = vrot.lane.b32.xlu0 %v643, 16
    %v646 = vpop.permute.xlu0 %645
    %v648 = vmul.f32 %v630, %v646
    %v649 = vrot.slane %v438, 4
    %v652 = vrot.slane %v648, 4
    %v654 = vsel %vm216, %v333, %v649
    %v655 = vsel %vm216, %v543, %v652
    %v656 = vsel %vm216, %v652, %v543
    %v657 = vsel %vm216, %v649, %v333
    %660 = vrot.lane.b32.xlu0 %v654, 104
    %v661 = vpop.permute.xlu0 %660
    %662 = vrot.lane.b32.xlu0 %v655, 104
    %v663 = vpop.permute.xlu0 %662
    %668 = vrot.lane.b32.xlu0 %v656, 112
    %v669 = vpop.permute.xlu0 %668
    %670 = vrot.lane.b32.xlu0 %v657, 112
    %v671 = vpop.permute.xlu0 %670
    %v674 = vsel %vm230, %v661, %v669
    %v675 = vsel %vm230, %v663, %v671
    %v676 = vlaneseq
    %v677 = vshrl.u32 %v676, 7
    %v678 = vsub.s32 1, %v677
    %v679 = vrot.slane %v21, %v678
    %vm683 = vcmask 1046528
    %v684 = vrot.slane %v19, 1
    %v685 = vrot.slane %v20, 1
    %v686 = vsel %vm683, %v684, %v685
    %v687 = vrot.slane %v21, 1
    %v688 = vsel %vm683, %v685, %v687
    %v692 = vsel %vm134, %v674, 0
    %v695 = vsel %vm134, %v675, 0
    %697 = vmatprep.subr.mxu0 0.0
    %698 = vmatpush1.msra.mxu0 %v686
    %699 = vmatprep.subr.mxu0 0.0
    %700 = vmatpush1.msra.mxu0 %v688
    %701 = vmatprep.subr.mxu0 0.0
    %702 = vmatpush1.msra.mxu0 0.0
    %703 = vmatprep.subr.mxu0 0.0
    %704 = vmatpush1.msra.mxu0 0.0
    %705 = vmatprep.subr.mxu0 0.0
    %706 = vmatpush1.msra.mxu0 0.0
    %707 = vmatprep.subr.mxu0 0.0
    %708 = vmatpush1.msra.mxu0 0.0
    %709 = vmatprep.subr.mxu0 0.0
    %710 = vmatpush1.msra.mxu0 0.0
    %711 = vmatprep.subr.mxu0 0.0
    %712 = vmatpush1.msra.mxu0 0.0
    %713 = vmatprep.subr.mxu0 0.0
    %714 = vmatpush1.msra.mxu0 0.0
    %715 = vmatprep.subr.mxu0 0.0
    %716 = vmatpush1.msra.mxu0 0.0
    %717 = vmatprep.subr.mxu0 0.0
    %718 = vmatpush1.msra.mxu0 0.0
    %719 = vmatprep.subr.mxu0 0.0
    %720 = vmatpush1.msra.mxu0 0.0
    %721 = vmatprep.subr.mxu0 0.0
    %722 = vmatpush1.msra.mxu0 0.0
    %723 = vmatprep.subr.mxu0 0.0
    %724 = vmatpush1.msra.mxu0 0.0
    %725 = vmatprep.subr.mxu0 0.0
    %726 = vmatpush1.msra.mxu0 0.0
    %727 = vmatprep.subr.mxu0 0.0
    %728 = vmatpush1.msra.mxu0 0.0
    %729 = vmatprep.subr.mxu0 0.0
    %730 = vmatpush1.msra.mxu0 0.0
    %731 = vmatprep.subr.mxu0 0.0
    %732 = vmatpush1.msra.mxu0 0.0
    %733 = vmatprep.subr.mxu0 0.0
    %734 = vmatpush1.msra.mxu0 0.0
    %735 = vmatprep.subr.mxu0 0.0
    %736 = vmatpush1.msra.mxu0 0.0
    %737 = vmatprep.subr.mxu0 0.0
    %738 = vmatpush1.msra.mxu0 0.0
    %739 = vmatprep.subr.mxu0 0.0
    %740 = vmatpush1.msra.mxu0 0.0
    %741 = vmatprep.subr.mxu0 0.0
    %742 = vmatpush1.msra.mxu0 0.0
    %743 = vmatprep.subr.mxu0 0.0
    %744 = vmatpush1.msra.mxu0 0.0
    %745 = vmatprep.subr.mxu0 0.0
    %746 = vmatpush1.msra.mxu0 0.0
    %747 = vmatprep.subr.mxu0 0.0
    %748 = vmatpush1.msra.mxu0 0.0
    %749 = vmatprep.subr.mxu0 0.0
    %750 = vmatpush1.msra.mxu0 0.0
    %751 = vmatprep.subr.mxu0 0.0
    %752 = vmatpush1.msra.mxu0 0.0
    %753 = vmatprep.subr.mxu0 0.0
    %754 = vmatpush1.msra.mxu0 0.0
    %755 = vmatprep.subr.mxu0 0.0
    %756 = vmatpush1.msra.mxu0 0.0
    %757 = vmatprep.subr.mxu0 0.0
    %758 = vmatpush1.msra.mxu0 0.0
    %759 = vmatprep.subr.mxu0 0.0
    %760 = vmatpush1.msra.mxu0 0.0
    %761 = vmatprep.mubr.f32.mxu0 0.0
    %762 = vmatmul.mubr.f32.gmra.mrb[0].mxu0 %v692
    %v763 = vpop.f32.mrb[0].mxu0
    %v764 = vadd.f32 %v679, %v763
    %v765 = vpop.f32.mrb[0].mxu0
    %766 = vmatprep.mubr.f32.mxu0 0.0
    %767 = vmatmul.mubr.f32.gmra.mrb[0].mxu0 %v695
    %v768 = vpop.f32.mrb[0].mxu0
    %v769 = vadd.f32 %v679, %v768
    %v770 = vpop.f32.mrb[0].mxu0
    %771 = vdwg.mxu0
    %v772 = vtanh.pop %v764
    %v773 = vtanh.pop %v769
    %v774 = vlaneseq
    %v775 = vshrl.u32 %v774, 7
    %v776 = vsub.s32 2, %v775
    %v777 = vrot.slane %v22, %v776
    %vm779 = vcmask 1045504
    %v780 = vrot.slane %v21, 2
    %v781 = vrot.slane %v22, 2
    %v782 = vsel %vm779, %v780, %v781
    %v785 = vsel %vm230, %v772, 0
    %v788 = vsel %vm230, %v773, 0
    %790 = vmatprep.subr.mxu0 0.0
    %791 = vmatpush1.msra.mxu0 %v782
    %792 = vmatprep.subr.mxu0 0.0
    %793 = vmatpush1.msra.mxu0 0.0
    %794 = vmatprep.subr.mxu0 0.0
    %795 = vmatpush1.msra.mxu0 0.0
    %796 = vmatprep.subr.mxu0 0.0
    %797 = vmatpush1.msra.mxu0 0.0
    %798 = vmatprep.subr.mxu0 0.0
    %799 = vmatpush1.msra.mxu0 0.0
    %800 = vmatprep.subr.mxu0 0.0
    %801 = vmatpush1.msra.mxu0 0.0
    %802 = vmatprep.subr.mxu0 0.0
    %803 = vmatpush1.msra.mxu0 0.0
    %804 = vmatprep.subr.mxu0 0.0
    %805 = vmatpush1.msra.mxu0 0.0
    %806 = vmatprep.subr.mxu0 0.0
    %807 = vmatpush1.msra.mxu0 0.0
    %808 = vmatprep.subr.mxu0 0.0
    %809 = vmatpush1.msra.mxu0 0.0
    %810 = vmatprep.subr.mxu0 0.0
    %811 = vmatpush1.msra.mxu0 0.0
    %812 = vmatprep.subr.mxu0 0.0
    %813 = vmatpush1.msra.mxu0 0.0
    %814 = vmatprep.subr.mxu0 0.0
    %815 = vmatpush1.msra.mxu0 0.0
    %816 = vmatprep.subr.mxu0 0.0
    %817 = vmatpush1.msra.mxu0 0.0
    %818 = vmatprep.subr.mxu0 0.0
    %819 = vmatpush1.msra.mxu0 0.0
    %820 = vmatprep.subr.mxu0 0.0
    %821 = vmatpush1.msra.mxu0 0.0
    %822 = vmatprep.subr.mxu0 0.0
    %823 = vmatpush1.msra.mxu0 0.0
    %824 = vmatprep.subr.mxu0 0.0
    %825 = vmatpush1.msra.mxu0 0.0
    %826 = vmatprep.subr.mxu0 0.0
    %827 = vmatpush1.msra.mxu0 0.0
    %828 = vmatprep.subr.mxu0 0.0
    %829 = vmatpush1.msra.mxu0 0.0
    %830 = vmatprep.subr.mxu0 0.0
    %831 = vmatpush1.msra.mxu0 0.0
    %832 = vmatprep.subr.mxu0 0.0
    %833 = vmatpush1.msra.mxu0 0.0
    %834 = vmatprep.subr.mxu0 0.0
    %835 = vmatpush1.msra.mxu0 0.0
    %836 = vmatprep.subr.mxu0 0.0
    %837 = vmatpush1.msra.mxu0 0.0
    %838 = vmatprep.subr.mxu0 0.0
    %839 = vmatpush1.msra.mxu0 0.0
    %840 = vmatprep.subr.mxu0 0.0
    %841 = vmatpush1.msra.mxu0 0.0
    %842 = vmatprep.subr.mxu0 0.0
    %843 = vmatpush1.msra.mxu0 0.0
    %844 = vmatprep.subr.mxu0 0.0
    %845 = vmatpush1.msra.mxu0 0.0
    %846 = vmatprep.subr.mxu0 0.0
    %847 = vmatpush1.msra.mxu0 0.0
    %848 = vmatprep.subr.mxu0 0.0
    %849 = vmatpush1.msra.mxu0 0.0
    %850 = vmatprep.subr.mxu0 0.0
    %851 = vmatpush1.msra.mxu0 0.0
    %852 = vmatprep.subr.mxu0 0.0
    %853 = vmatpush1.msra.mxu0 0.0
    %854 = vmatprep.mubr.f32.mxu0 0.0
    %855 = vmatmul.mubr.f32.gmra.mrb[0].mxu0 %v785
    %v856 = vpop.f32.mrb[0].mxu0
    %v857 = vadd.f32 %v777, %v856
    %v858 = vpop.f32.mrb[0].mxu0
    %859 = vmatprep.mubr.f32.mxu0 0.0
    %860 = vmatmul.mubr.f32.gmra.mrb[0].mxu0 %v788
    %v861 = vpop.f32.mrb[0].mxu0
    %v862 = vadd.f32 %v777, %v861
    %v863 = vpop.f32.mrb[0].mxu0
    %864 = vdwg.mxu0
    %v866 = vrot.slane %v857, 4
    %v868 = vmax.f32 %v857, %v866
    %v869 = vmax.f32 %v868, %v862
    %v871 = vrot.slane %v862, 4
    %v873 = vmax.f32 %v869, %v871
    %v874 = vsub.f32 %v857, %v873
    %v875 = vmul.f32 %v874, 1.442695
    %v876 = vpow.pop %v875
    %v878 = vrot.slane %v873, 4
    %v880 = vsub.f32 %v857, %v878
    %v881 = vmul.f32 %v880, 1.442695
    %v882 = vpow.pop %v881
    %v883 = vsub.f32 %v862, %v873
    %v884 = vmul.f32 %v883, 1.442695
    %v885 = vpow.pop %v884
    %v886 = vsub.f32 %v862, %v878
    %v887 = vmul.f32 %v886, 1.442695
    %v888 = vpow.pop %v887
    %v890 = vrot.slane %v882, 4
    %v892 = vadd.f32 %v876, %v890
    %v893 = vadd.f32 %v892, %v885
    %v895 = vrot.slane %v888, 4
    %v897 = vadd.f32 %v893, %v895
    %v898 = vrcp.pop %v897
    %v899 = vmul.f32 %v876, %v898
    %901 = vset.pattern.permute.xlu0 0
    %902 = vperm.xlu0 %901, %v899
    %v903 = vpop.permute.xlu0 %902
    %v905 = vmul.f32 %v903, %v674
    %v907 = vrot.slane %v898, 4
    %v909 = vmul.f32 %v882, %v907
    %911 = vset.pattern.permute.xlu0 0
    %912 = vperm.xlu0 %911, %v909
    %v913 = vpop.permute.xlu0 %912
    %v915 = vmul.f32 %v913, %v674
    %v917 = vrot.slane %v915, 4
    %v919 = vadd.f32 %v905, %v917
    %v920 = vmul.f32 %v885, %v898
    %922 = vset.pattern.permute.xlu0 0
    %923 = vperm.xlu0 %922, %v920
    %v924 = vpop.permute.xlu0 %923
    %v926 = vmul.f32 %v924, %v675
    %v927 = vadd.f32 %v919, %v926
    %v928 = vmul.f32 %v888, %v907
    %930 = vset.pattern.permute.xlu0 0
    %931 = vperm.xlu0 %930, %v928
    %v932 = vpop.permute.xlu0 %931
    %v934 = vmul.f32 %v932, %v675
    %v936 = vrot.slane %v934, 4
    %v938 = vadd.f32 %v927, %v936
    %v939 = vlaneseq
    %v940 = vshrl.u32 %v939, 7
    %v941 = vsub.s32 5, %v940
    %v942 = vrot.slane %v22, %v941
    %v943 = vsub.f32 %v938, %v942
    %v944 = vadd.f32 %v22, 1e-05
    %v945 = vrsqrt.pop %v944
    %v946 = vlaneseq
    %v947 = vshrl.u32 %v946, 7
    %v948 = vsub.s32 6, %v947
    %v949 = vrot.slane %v945, %v948
    %v950 = vmul.f32 %v943, %v949
    %v951 = vlaneseq
    %v952 = vshrl.u32 %v951, 7
    %v953 = vsub.s32 3, %v952
    %v954 = vrot.slane %v22, %v953
    %v955 = vmul.f32 %v950, %v954
    %v956 = vlaneseq
    %v957 = vshrl.u32 %v956, 7
    %v958 = vsub.s32 4, %v957
    %v959 = vrot.slane %v22, %v958
    %v960 = vadd.f32 %v955, %v959
    %v961 = vlaneseq
    %v962 = vshrl.u32 %v961, 7
    %v963 = vsub.s32 7, %v962
    %v964 = vrot.slane %v25, %v963
    %vm967 = vcmask 1040384
    %v968 = vrot.slane %v22, 7
    %v969 = vrot.slane %v23, 7
    %v970 = vsel %vm967, %v968, %v969
    %v971 = vrot.slane %v24, 7
    %v972 = vsel %vm967, %v969, %v971
    %v976 = vsel %vm134, %v960, 0
    %978 = vmatprep.subr.mxu0 0.0
    %979 = vmatpush1.msra.mxu0 %v970
    %980 = vmatprep.subr.mxu0 0.0
    %981 = vmatpush1.msra.mxu0 %v972
    %982 = vmatprep.subr.mxu0 0.0
    %983 = vmatpush1.msra.mxu0 0.0
    %984 = vmatprep.subr.mxu0 0.0
    %985 = vmatpush1.msra.mxu0 0.0
    %986 = vmatprep.subr.mxu0 0.0
    %987 = vmatpush1.msra.mxu0 0.0
    %988 = vmatprep.subr.mxu0 0.0
    %989 = vmatpush1.msra.mxu0 0.0
    %990 = vmatprep.subr.mxu0 0.0
    %991 = vmatpush1.msra.mxu0 0.0
    %992 = vmatprep.subr.mxu0 0.0
    %993 = vmatpush1.msra.mxu0 0.0
    %994 = vmatprep.subr.mxu0 0.0
    %995 = vmatpush1.msra.mxu0 0.0
    %996 = vmatprep.subr.mxu0 0.0
    %997 = vmatpush1.msra.mxu0 0.0
    %998 = vmatprep.subr.mxu0 0.0
    %999 = vmatpush1.msra.mxu0 0.0
    %1000 = vmatprep.subr.mxu0 0.0
    %1001 = vmatpush1.msra.mxu0 0.0
    %1002 = vmatprep.subr.mxu0 0.0
    %1003 = vmatpush1.msra.mxu0 0.0
    %1004 = vmatprep.subr.mxu0 0.0
    %1005 = vmatpush1.msra.mxu0 0.0
    %1006 = vmatprep.subr.mxu0 0.0
    %1007 = vmatpush1.msra.mxu0 0.0
    %1008 = vmatprep.subr.mxu0 0.0
    %1009 = vmatpush1.msra.mxu0 0.0
    %1010 = vmatprep.subr.mxu0 0.0
    %1011 = vmatpush1.msra.mxu0 0.0
    %1012 = vmatprep.subr.mxu0 0.0
    %1013 = vmatpush1.msra.mxu0 0.0
    %1014 = vmatprep.subr.mxu0 0.0
    %1015 = vmatpush1.msra.mxu0 0.0
    %1016 = vmatprep.subr.mxu0 0.0
    %1017 = vmatpush1.msra.mxu0 0.0
    %1018 = vmatprep.subr.mxu0 0.0
    %1019 = vmatpush1.msra.mxu0 0.0
    %1020 = vmatprep.subr.mxu0 0.0
    %1021 = vmatpush1.msra.mxu0 0.0
    %1022 = vmatprep.subr.mxu0 0.0
    %1023 = vmatpush1.msra.mxu0 0.0
    %1024 = vmatprep.subr.mxu0 0.0
    %1025 = vmatpush1.msra.mxu0 0.0
    %1026 = vmatprep.subr.mxu0 0.0
    %1027 = vmatpush1.msra.mxu0 0.0
    %1028 = vmatprep.subr.mxu0 0.0
    %1029 = vmatpush1.msra.mxu0 0.0
    %1030 = vmatprep.subr.mxu0 0.0
    %1031 = vmatpush1.msra.mxu0 0.0
    %1032 = vmatprep.subr.mxu0 0.0
    %1033 = vmatpush1.msra.mxu0 0.0
    %1034 = vmatprep.subr.mxu0 0.0
    %1035 = vmatpush1.msra.mxu0 0.0
    %1036 = vmatprep.subr.mxu0 0.0
    %1037 = vmatpush1.msra.mxu0 0.0
    %1038 = vmatprep.subr.mxu0 0.0
    %1039 = vmatpush1.msra.mxu0 0.0
    %1040 = vmatprep.subr.mxu0 0.0
    %1041 = vmatpush1.msra.mxu0 0.0
    %1042 = vmatprep.mubr.f32.mxu0 0.0
    %1043 = vmatmul.mubr.f32.gmra.mrb[0].mxu0 %v976
    %v1044 = vpop.f32.mrb[0].mxu0
    %v1045 = vadd.f32 %v964, %v1044
    %v1046 = vpop.f32.mrb[0].mxu0
    %1047 = vdwg.mxu0
    %v1049 = vrot.slane %v1045, 2
    %v1051 = vrot.slane %v1045, 6
    %vm1053 = vcmask 1041408
    %v1054 = vsel %vm1053, %v1049, %v1051
    %vm1055 = vcmp.lt.s32.totalorder %v228, 2
    %v1057 = vrot.slane %v25, 7
    %v1058 = vsel %vm967, %v971, %v1057
    %1060 = vmatprep.subr.mxu0 0.0
    %1061 = vmatpush1.msra.mxu0 %v1058
    %1062 = vmatprep.subr.mxu0 0.0
    %1063 = vmatpush1.msra.mxu0 0.0
    %1064 = vmatprep.subr.mxu0 0.0
    %1065 = vmatpush1.msra.mxu0 0.0
    %1066 = vmatprep.subr.mxu0 0.0
    %1067 = vmatpush1.msra.mxu0 0.0
    %1068 = vmatprep.subr.mxu0 0.0
    %1069 = vmatpush1.msra.mxu0 0.0
    %1070 = vmatprep.subr.mxu0 0.0
    %1071 = vmatpush1.msra.mxu0 0.0
    %1072 = vmatprep.subr.mxu0 0.0
    %1073 = vmatpush1.msra.mxu0 0.0
    %1074 = vmatprep.subr.mxu0 0.0
    %1075 = vmatpush1.msra.mxu0 0.0
    %1076 = vmatprep.subr.mxu0 0.0
    %1077 = vmatpush1.msra.mxu0 0.0
    %1078 = vmatprep.subr.mxu0 0.0
    %1079 = vmatpush1.msra.mxu0 0.0
    %1080 = vmatprep.subr.mxu0 0.0
    %1081 = vmatpush1.msra.mxu0 0.0
    %1082 = vmatprep.subr.mxu0 0.0
    %1083 = vmatpush1.msra.mxu0 0.0
    %1084 = vmatprep.subr.mxu0 0.0
    %1085 = vmatpush1.msra.mxu0 0.0
    %1086 = vmatprep.subr.mxu0 0.0
    %1087 = vmatpush1.msra.mxu0 0.0
    %1088 = vmatprep.subr.mxu0 0.0
    %1089 = vmatpush1.msra.mxu0 0.0
    %1090 = vmatprep.subr.mxu0 0.0
    %1091 = vmatpush1.msra.mxu0 0.0
    %1092 = vmatprep.subr.mxu0 0.0
    %1093 = vmatpush1.msra.mxu0 0.0
    %1094 = vmatprep.subr.mxu0 0.0
    %1095 = vmatpush1.msra.mxu0 0.0
    %1096 = vmatprep.subr.mxu0 0.0
    %1097 = vmatpush1.msra.mxu0 0.0
    %1098 = vmatprep.subr.mxu0 0.0
    %1099 = vmatpush1.msra.mxu0 0.0
    %1100 = vmatprep.subr.mxu0 0.0
    %1101 = vmatpush1.msra.mxu0 0.0
    %1102 = vmatprep.subr.mxu0 0.0
    %1103 = vmatpush1.msra.mxu0 0.0
    %1104 = vmatprep.subr.mxu0 0.0
    %1105 = vmatpush1.msra.mxu0 0.0
    %1106 = vmatprep.subr.mxu0 0.0
    %1107 = vmatpush1.msra.mxu0 0.0
    %1108 = vmatprep.subr.mxu0 0.0
    %1109 = vmatpush1.msra.mxu0 0.0
    %1110 = vmatprep.subr.mxu0 0.0
    %1111 = vmatpush1.msra.mxu0 0.0
    %1112 = vmatprep.subr.mxu0 0.0
    %1113 = vmatpush1.msra.mxu0 0.0
    %1114 = vmatprep.subr.mxu0 0.0
    %1115 = vmatpush1.msra.mxu0 0.0
    %1116 = vmatprep.subr.mxu0 0.0
    %1117 = vmatpush1.msra.mxu0 0.0
    %1118 = vmatprep.subr.mxu0 0.0
    %1119 = vmatpush1.msra.mxu0 0.0
    %1120 = vmatprep.subr.mxu0 0.0
    %1121 = vmatpush1.msra.mxu0 0.0
    %1122 = vmatprep.subr.mxu0 0.0
    %1123 = vmatpush1.msra.mxu0 0.0
    %1124 = vmatprep.mubr.f32.mxu0 0.0
    %1125 = vmatmul.mubr.f32.gmra.mrb[0].mxu0 %v232
    %v1126 = vpop.f32.mrb[0].mxu0
    %v1127 = vadd.f32 0.0, %v1126
    %v1128 = vpop.f32.mrb[0].mxu0
    %1129 = vdwg.mxu0
    %v1130 = vadd.f32 %v1045, %v1127
    %1132 = vrot.lane.b32.xlu0 %v1130, 96
    %v1133 = vpop.permute.xlu0 %1132
    %v1135 = vsel %vm1055, %v1130, %v1133
    %v1136 = vxor.u32 %v1135, 2147483648
    %v1137 = vmul.f32 %v1136, 1.442695
    %v1138 = vpow.pop %v1137
    %v1139 = vadd.f32 %v1138, 1.0
    %v1140 = vrcp.pop %v1139
    %v1141 = vmul.f32 1.0, %v1140
    %v1142 = vtanh.pop %v1135
    %v1143 = vmul.f32 %v1141, 0.0
    %1145 = vrot.lane.b32.xlu0 %v1142, 112
    %v1146 = vpop.permute.xlu0 %1145
    %v1148 = vmul.f32 %v1141, %v1146
    %1150 = vrot.lane.b32.xlu0 %v1148, 8
    %v1151 = vpop.permute.xlu0 %1150
    %v1153 = vadd.f32 %v1143, %v1151
    %v1154 = vtanh.pop %v1153
    %1156 = vrot.lane.b32.xlu0 %v1154, 16
    %v1157 = vpop.permute.xlu0 %1156
    %v1159 = vmul.f32 %v1141, %v1157
    %1161 = vrot.lane.b32.xlu0 %v1159, 104
    %v1162 = vpop.permute.xlu0 %1161
    %v1163 = vsel %vm230, %v1162, 0
    %1165 = vmatprep.subr.mxu0 0.0
    %1166 = vmatpush1.msra.mxu0 %v1058
    %1167 = vmatprep.subr.mxu0 0.0
    %1168 = vmatpush1.msra.mxu0 0.0
    %1169 = vmatprep.subr.mxu0 0.0
    %1170 = vmatpush1.msra.mxu0 0.0
    %1171 = vmatprep.subr.mxu0 0.0
    %1172 = vmatpush1.msra.mxu0 0.0
    %1173 = vmatprep.subr.mxu0 0.0
    %1174 = vmatpush1.msra.mxu0 0.0
    %1175 = vmatprep.subr.mxu0 0.0
    %1176 = vmatpush1.msra.mxu0 0.0
    %1177 = vmatprep.subr.mxu0 0.0
    %1178 = vmatpush1.msra.mxu0 0.0
    %1179 = vmatprep.subr.mxu0 0.0
    %1180 = vmatpush1.msra.mxu0 0.0
    %1181 = vmatprep.subr.mxu0 0.0
    %1182 = vmatpush1.msra.mxu0 0.0
    %1183 = vmatprep.subr.mxu0 0.0
    %1184 = vmatpush1.msra.mxu0 0.0
    %1185 = vmatprep.subr.mxu0 0.0
    %1186 = vmatpush1.msra.mxu0 0.0
    %1187 = vmatprep.subr.mxu0 0.0
    %1188 = vmatpush1.msra.mxu0 0.0
    %1189 = vmatprep.subr.mxu0 0.0
    %1190 = vmatpush1.msra.mxu0 0.0
    %1191 = vmatprep.subr.mxu0 0.0
    %1192 = vmatpush1.msra.mxu0 0.0
    %1193 = vmatprep.subr.mxu0 0.0
    %1194 = vmatpush1.msra.mxu0 0.0
    %1195 = vmatprep.subr.mxu0 0.0
    %1196 = vmatpush1.msra.mxu0 0.0
    %1197 = vmatprep.subr.mxu0 0.0
    %1198 = vmatpush1.msra.mxu0 0.0
    %1199 = vmatprep.subr.mxu0 0.0
    %1200 = vmatpush1.msra.mxu0 0.0
    %1201 = vmatprep.subr.mxu0 0.0
    %1202 = vmatpush1.msra.mxu0 0.0
    %1203 = vmatprep.subr.mxu0 0.0
    %1204 = vmatpush1.msra.mxu0 0.0
    %1205 = vmatprep.subr.mxu0 0.0
    %1206 = vmatpush1.msra.mxu0 0.0
    %1207 = vmatprep.subr.mxu0 0.0
    %1208 = vmatpush1.msra.mxu0 0.0
    %1209 = vmatprep.subr.mxu0 0.0
    %1210 = vmatpush1.msra.mxu0 0.0
    %1211 = vmatprep.subr.mxu0 0.0
    %1212 = vmatpush1.msra.mxu0 0.0
    %1213 = vmatprep.subr.mxu0 0.0
    %1214 = vmatpush1.msra.mxu0 0.0
    %1215 = vmatprep.subr.mxu0 0.0
    %1216 = vmatpush1.msra.mxu0 0.0
    %1217 = vmatprep.subr.mxu0 0.0
    %1218 = vmatpush1.msra.mxu0 0.0
    %1219 = vmatprep.subr.mxu0 0.0
    %1220 = vmatpush1.msra.mxu0 0.0
    %1221 = vmatprep.subr.mxu0 0.0
    %1222 = vmatpush1.msra.mxu0 0.0
    %1223 = vmatprep.subr.mxu0 0.0
    %1224 = vmatpush1.msra.mxu0 0.0
    %1225 = vmatprep.subr.mxu0 0.0
    %1226 = vmatpush1.msra.mxu0 0.0
    %1227 = vmatprep.subr.mxu0 0.0
    %1228 = vmatpush1.msra.mxu0 0.0
    %1229 = vmatprep.mubr.f32.mxu0 0.0
    %1230 = vmatmul.mubr.f32.gmra.mrb[0].mxu0 %v1163
    %v1231 = vpop.f32.mrb[0].mxu0
    %v1232 = vadd.f32 0.0, %v1231
    %v1233 = vpop.f32.mrb[0].mxu0
    %1234 = vdwg.mxu0
    %v1235 = vadd.f32 %v1054, %v1232
    %1237 = vrot.lane.b32.xlu0 %v1235, 96
    %v1238 = vpop.permute.xlu0 %1237
    %v1240 = vsel %vm1055, %v1235, %v1238
    %v1241 = vxor.u32 %v1240, 2147483648
    %v1242 = vmul.f32 %v1241, 1.442695
    %v1243 = vpow.pop %v1242
    %v1244 = vadd.f32 %v1243, 1.0
    %v1245 = vrcp.pop %v1244
    %v1246 = vmul.f32 1.0, %v1245
    %v1247 = vtanh.pop %v1240
    %v1248 = vmul.f32 %v1246, %v1153
    %1250 = vrot.lane.b32.xlu0 %v1247, 112
    %v1251 = vpop.permute.xlu0 %1250
    %v1253 = vmul.f32 %v1246, %v1251
    %1255 = vrot.lane.b32.xlu0 %v1253, 8
    %v1256 = vpop.permute.xlu0 %1255
    %v1258 = vadd.f32 %v1248, %v1256
    %v1259 = vtanh.pop %v1258
    %1261 = vrot.lane.b32.xlu0 %v1259, 16
    %v1262 = vpop.permute.xlu0 %1261
    %v1264 = vmul.f32 %v1246, %v1262
    %v1266 = vrot.slane %v1264, 6
    %v1268 = vsel %vm1053, %v1159, %v1266
    %v1269 = vrot.slane %v1264, 2
    %v1271 = vsel %vm1053, %v1269, %v1159
    %1273 = vrot.lane.b32.xlu0 %v1268, 104
    %v1274 = vpop.permute.xlu0 %1273
    %1277 = vrot.lane.b32.xlu0 %v1271, 112
    %v1278 = vpop.permute.xlu0 %1277
    %v1280 = vsel %vm230, %v1274, %v1278
    %v1281 = vlaneseq
    %v1282 = vshrl.u32 %v1281, 7
    %v1283 = vsub.s32 0, %v1282
    %v1284 = vrot.slane %v28, %v1283
    %v1286 = vsel %vm134, %v1280, 0
    %1288 = vmatprep.subr.mxu0 0.0
    %1289 = vmatpush1.msra.mxu0 %v26
    %1290 = vmatprep.subr.mxu0 0.0
    %1291 = vmatpush1.msra.mxu0 %v27
    %1292 = vmatprep.subr.mxu0 0.0
    %1293 = vmatpush1.msra.mxu0 0.0
    %1294 = vmatprep.subr.mxu0 0.0
    %1295 = vmatpush1.msra.mxu0 0.0
    %1296 = vmatprep.subr.mxu0 0.0
    %1297 = vmatpush1.msra.mxu0 0.0
    %1298 = vmatprep.subr.mxu0 0.0
    %1299 = vmatpush1.msra.mxu0 0.0
    %1300 = vmatprep.subr.mxu0 0.0
    %1301 = vmatpush1.msra.mxu0 0.0
    %1302 = vmatprep.subr.mxu0 0.0
    %1303 = vmatpush1.msra.mxu0 0.0
    %1304 = vmatprep.subr.mxu0 0.0
    %1305 = vmatpush1.msra.mxu0 0.0
    %1306 = vmatprep.subr.mxu0 0.0
    %1307 = vmatpush1.msra.mxu0 0.0
    %1308 = vmatprep.subr.mxu0 0.0
    %1309 = vmatpush1.msra.mxu0 0.0
    %1310 = vmatprep.subr.mxu0 0.0
    %1311 = vmatpush1.msra.mxu0 0.0
    %1312 = vmatprep.subr.mxu0 0.0
    %1313 = vmatpush1.msra.mxu0 0.0
    %1314 = vmatprep.subr.mxu0 0.0
    %1315 = vmatpush1.msra.mxu0 0.0
    %1316 = vmatprep.subr.mxu0 0.0
    %1317 = vmatpush1.msra.mxu0 0.0
    %1318 = vmatprep.subr.mxu0 0.0
    %1319 = vmatpush1.msra.mxu0 0.0
    %1320 = vmatprep.subr.mxu0 0.0
    %1321 = vmatpush1.msra.mxu0 0.0
    %1322 = vmatprep.subr.mxu0 0.0
    %1323 = vmatpush1.msra.mxu0 0.0
    %1324 = vmatprep.subr.mxu0 0.0
    %1325 = vmatpush1.msra.mxu0 0.0
    %1326 = vmatprep.subr.mxu0 0.0
    %1327 = vmatpush1.msra.mxu0 0.0
    %1328 = vmatprep.subr.mxu0 0.0
    %1329 = vmatpush1.msra.mxu0 0.0
    %1330 = vmatprep.subr.mxu0 0.0
    %1331 = vmatpush1.msra.mxu0 0.0
    %1332 = vmatprep.subr.mxu0 0.0
    %1333 = vmatpush1.msra.mxu0 0.0
    %1334 = vmatprep.subr.mxu0 0.0
    %1335 = vmatpush1.msra.mxu0 0.0
    %1336 = vmatprep.subr.mxu0 0.0
    %1337 = vmatpush1.msra.mxu0 0.0
    %1338 = vmatprep.subr.mxu0 0.0
    %1339 = vmatpush1.msra.mxu0 0.0
    %1340 = vmatprep.subr.mxu0 0.0
    %1341 = vmatpush1.msra.mxu0 0.0
    %1342 = vmatprep.subr.mxu0 0.0
    %1343 = vmatpush1.msra.mxu0 0.0
    %1344 = vmatprep.subr.mxu0 0.0
    %1345 = vmatpush1.msra.mxu0 0.0
    %1346 = vmatprep.subr.mxu0 0.0
    %1347 = vmatpush1.msra.mxu0 0.0
    %1348 = vmatprep.subr.mxu0 0.0
    %1349 = vmatpush1.msra.mxu0 0.0
    %1350 = vmatprep.subr.mxu0 0.0
    %1351 = vmatpush1.msra.mxu0 0.0
    %1352 = vmatprep.mubr.f32.mxu0 0.0
    %1353 = vmatmul.mubr.f32.gmra.mrb[0].mxu0 %v1286
    %v1354 = vpop.f32.mrb[0].mxu0
    %v1355 = vadd.f32 %v1284, %v1354
    %v1356 = vpop.f32.mrb[0].mxu0
    %1357 = vdwg.mxu0
    %v1358 = vtanh.pop %v1355
    %v1359 = vlaneseq
    %v1360 = vshrl.u32 %v1359, 7
    %v1361 = vsub.s32 1, %v1360
    %v1362 = vrot.slane %v29, %v1361
    %v1365 = vrot.slane %v28, 1
    %v1366 = vrot.slane %v29, 1
    %v1367 = vsel %vm683, %v1365, %v1366
    %v1370 = vsel %vm230, %v1358, 0
    %1372 = vmatprep.subr.mxu0 0.0
    %1373 = vmatpush1.msra.mxu0 %v1367
    %1374 = vmatprep.subr.mxu0 0.0
    %1375 = vmatpush1.msra.mxu0 0.0
    %1376 = vmatprep.subr.mxu0 0.0
    %1377 = vmatpush1.msra.mxu0 0.0
    %1378 = vmatprep.subr.mxu0 0.0
    %1379 = vmatpush1.msra.mxu0 0.0
    %1380 = vmatprep.subr.mxu0 0.0
    %1381 = vmatpush1.msra.mxu0 0.0
    %1382 = vmatprep.subr.mxu0 0.0
    %1383 = vmatpush1.msra.mxu0 0.0
    %1384 = vmatprep.subr.mxu0 0.0
    %1385 = vmatpush1.msra.mxu0 0.0
    %1386 = vmatprep.subr.mxu0 0.0
    %1387 = vmatpush1.msra.mxu0 0.0
    %1388 = vmatprep.subr.mxu0 0.0
    %1389 = vmatpush1.msra.mxu0 0.0
    %1390 = vmatprep.subr.mxu0 0.0
    %1391 = vmatpush1.msra.mxu0 0.0
    %1392 = vmatprep.subr.mxu0 0.0
    %1393 = vmatpush1.msra.mxu0 0.0
    %1394 = vmatprep.subr.mxu0 0.0
    %1395 = vmatpush1.msra.mxu0 0.0
    %1396 = vmatprep.subr.mxu0 0.0
    %1397 = vmatpush1.msra.mxu0 0.0
    %1398 = vmatprep.subr.mxu0 0.0
    %1399 = vmatpush1.msra.mxu0 0.0
    %1400 = vmatprep.subr.mxu0 0.0
    %1401 = vmatpush1.msra.mxu0 0.0
    %1402 = vmatprep.subr.mxu0 0.0
    %1403 = vmatpush1.msra.mxu0 0.0
    %1404 = vmatprep.subr.mxu0 0.0
    %1405 = vmatpush1.msra.mxu0 0.0
    %1406 = vmatprep.subr.mxu0 0.0
    %1407 = vmatpush1.msra.mxu0 0.0
    %1408 = vmatprep.subr.mxu0 0.0
    %1409 = vmatpush1.msra.mxu0 0.0
    %1410 = vmatprep.subr.mxu0 0.0
    %1411 = vmatpush1.msra.mxu0 0.0
    %1412 = vmatprep.subr.mxu0 0.0
    %1413 = vmatpush1.msra.mxu0 0.0
    %1414 = vmatprep.subr.mxu0 0.0
    %1415 = vmatpush1.msra.mxu0 0.0
    %1416 = vmatprep.subr.mxu0 0.0
    %1417 = vmatpush1.msra.mxu0 0.0
    %1418 = vmatprep.subr.mxu0 0.0
    %1419 = vmatpush1.msra.mxu0 0.0
    %1420 = vmatprep.subr.mxu0 0.0
    %1421 = vmatpush1.msra.mxu0 0.0
    %1422 = vmatprep.subr.mxu0 0.0
    %1423 = vmatpush1.msra.mxu0 0.0
    %1424 = vmatprep.subr.mxu0 0.0
    %1425 = vmatpush1.msra.mxu0 0.0
    %1426 = vmatprep.subr.mxu0 0.0
    %1427 = vmatpush1.msra.mxu0 0.0
    %1428 = vmatprep.subr.mxu0 0.0
    %1429 = vmatpush1.msra.mxu0 0.0
    %1430 = vmatprep.subr.mxu0 0.0
    %1431 = vmatpush1.msra.mxu0 0.0
    %1432 = vmatprep.subr.mxu0 0.0
    %1433 = vmatpush1.msra.mxu0 0.0
    %1434 = vmatprep.subr.mxu0 0.0
    %1435 = vmatpush1.msra.mxu0 0.0
    %1436 = vmatprep.mubr.f32.mxu0 0.0
    %1437 = vmatmul.mubr.f32.gmra.mrb[0].mxu0 %v1370
    %v1438 = vpop.f32.mrb[0].mxu0
    %v1439 = vadd.f32 %v1362, %v1438
    %v1440 = vpop.f32.mrb[0].mxu0
    %1441 = vdwg.mxu0
    %v1443 = vrot.slane %v1439, 2
    %v1445 = vmax.f32 %v1439, %v1443
    %v1446 = vsub.f32 %v1439, %v1445
    %v1447 = vmul.f32 %v1446, 1.442695
    %v1448 = vpow.pop %v1447
    %v1450 = vrot.slane %v1445, 6
    %v1452 = vsub.f32 %v1439, %v1450
    %v1453 = vmul.f32 %v1452, 1.442695
    %v1454 = vpow.pop %v1453
    %v1456 = vrot.slane %v1454, 2
    %v1458 = vadd.f32 %v1448, %v1456
    %v1459 = vrcp.pop %v1458
    %v1460 = vmul.f32 %v1448, %v1459
    %1462 = vset.pattern.permute.xlu0 0
    %1463 = vperm.xlu0 %1462, %v1460
    %v1464 = vpop.permute.xlu0 %1463
    %v1466 = vmul.f32 %v1464, %v1280
    %v1468 = vrot.slane %v1459, 6
    %v1470 = vmul.f32 %v1454, %v1468
    %1472 = vset.pattern.permute.xlu0 0
    %1473 = vperm.xlu0 %1472, %v1470
    %v1474 = vpop.permute.xlu0 %1473
    %v1476 = vmul.f32 %v1474, %v1280
    %v1478 = vrot.slane %v1476, 2
    %v1480 = vadd.f32 %v1466, %v1478
    %v1481 = vlaneseq
    %v1482 = vshrl.u32 %v1481, 7
    %v1483 = vsub.s32 4, %v1482
    %v1484 = vrot.slane %v29, %v1483
    %v1485 = vsub.f32 %v1480, %v1484
    %v1486 = vadd.f32 %v29, 1e-05
    %v1487 = vrsqrt.pop %v1486
    %v1488 = vlaneseq
    %v1489 = vshrl.u32 %v1488, 7
    %v1490 = vsub.s32 5, %v1489
    %v1491 = vrot.slane %v1487, %v1490
    %v1492 = vmul.f32 %v1485, %v1491
    %v1493 = vlaneseq
    %v1494 = vshrl.u32 %v1493, 7
    %v1495 = vsub.s32 2, %v1494
    %v1496 = vrot.slane %v29, %v1495
    %v1497 = vmul.f32 %v1492, %v1496
    %v1498 = vlaneseq
    %v1499 = vshrl.u32 %v1498, 7
    %v1500 = vsub.s32 3, %v1499
    %v1501 = vrot.slane %v29, %v1500
    %v1502 = vadd.f32 %v1497, %v1501
    %v1503 = vlaneseq
    %v1504 = vshrl.u32 %v1503, 7
    %v1505 = vsub.s32 6, %v1504
    %v1506 = vrot.slane %v31, %v1505
    %v1509 = vrot.slane %v29, 6
    %v1510 = vrot.slane %v30, 6
    %v1511 = vsel %vm1053, %v1509, %v1510
    %v1512 = vrot.slane %v31, 6
    %v1513 = vsel %vm1053, %v1510, %v1512
    %v1517 = vsel %vm134, %v1502, 0
    %1519 = vmatprep.subr.mxu0 0.0
    %1520 = vmatpush1.msra.mxu0 %v1511
    %1521 = vmatprep.subr.mxu0 0.0
    %1522 = vmatpush1.msra.mxu0 %v1513
    %1523 = vmatprep.subr.mxu0 0.0
    %1524 = vmatpush1.msra.mxu0 0.0
    %1525 = vmatprep.subr.mxu0 0.0
    %1526 = vmatpush1.msra.mxu0 0.0
    %1527 = vmatprep.subr.mxu0 0.0
    %1528 = vmatpush1.msra.mxu0 0.0
    %1529 = vmatprep.subr.mxu0 0.0
    %1530 = vmatpush1.msra.mxu0 0.0
    %1531 = vmatprep.subr.mxu0 0.0
    %1532 = vmatpush1.msra.mxu0 0.0
    %1533 = vmatprep.subr.mxu0 0.0
    %1534 = vmatpush1.msra.mxu0 0.0
    %1535 = vmatprep.subr.mxu0 0.0
    %1536 = vmatpush1.msra.mxu0 0.0
    %1537 = vmatprep.subr.mxu0 0.0
    %1538 = vmatpush1.msra.mxu0 0.0
    %1539 = vmatprep.subr.mxu0 0.0
    %1540 = vmatpush1.msra.mxu0 0.0
    %1541 = vmatprep.subr.mxu0 0.0
    %1542 = vmatpush1.msra.mxu0 0.0
    %1543 = vmatprep.subr.mxu0 0.0
    %1544 = vmatpush1.msra.mxu0 0.0
    %1545 = vmatprep.subr.mxu0 0.0
    %1546 = vmatpush1.msra.mxu0 0.0
    %1547 = vmatprep.subr.mxu0 0.0
    %1548 = vmatpush1.msra.mxu0 0.0
    %1549 = vmatprep.subr.mxu0 0.0
    %1550 = vmatpush1.msra.mxu0 0.0
    %1551 = vmatprep.subr.mxu0 0.0
    %1552 = vmatpush1.msra.mxu0 0.0
    %1553 = vmatprep.subr.mxu0 0.0
    %1554 = vmatpush1.msra.mxu0 0.0
    %1555 = vmatprep.subr.mxu0 0.0
    %1556 = vmatpush1.msra.mxu0 0.0
    %1557 = vmatprep.subr.mxu0 0.0
    %1558 = vmatpush1.msra.mxu0 0.0
    %1559 = vmatprep.subr.mxu0 0.0
    %1560 = vmatpush1.msra.mxu0 0.0
    %1561 = vmatprep.subr.mxu0 0.0
    %1562 = vmatpush1.msra.mxu0 0.0
    %1563 = vmatprep.subr.mxu0 0.0
    %1564 = vmatpush1.msra.mxu0 0.0
    %1565 = vmatprep.subr.mxu0 0.0
    %1566 = vmatpush1.msra.mxu0 0.0
    %1567 = vmatprep.subr.mxu0 0.0
    %1568 = vmatpush1.msra.mxu0 0.0
    %1569 = vmatprep.subr.mxu0 0.0
    %1570 = vmatpush1.msra.mxu0 0.0
    %1571 = vmatprep.subr.mxu0 0.0
    %1572 = vmatpush1.msra.mxu0 0.0
    %1573 = vmatprep.subr.mxu0 0.0
    %1574 = vmatpush1.msra.mxu0 0.0
    %1575 = vmatprep.subr.mxu0 0.0
    %1576 = vmatpush1.msra.mxu0 0.0
    %1577 = vmatprep.subr.mxu0 0.0
    %1578 = vmatpush1.msra.mxu0 0.0
    %1579 = vmatprep.subr.mxu0 0.0
    %1580 = vmatpush1.msra.mxu0 0.0
    %1581 = vmatprep.subr.mxu0 0.0
    %1582 = vmatpush1.msra.mxu0 0.0
    %1583 = vmatprep.mubr.f32.mxu0 0.0
    %1584 = vmatmul.mubr.f32.gmra.mrb[0].mxu0 %v1517
    %v1585 = vpop.f32.mrb[0].mxu0
    %v1586 = vadd.f32 %v1506, %v1585
    %v1587 = vpop.f32.mrb[0].mxu0
    %1588 = vdwg.mxu0
    %vm1589 = vcmask 25600
    %1590 = vst.msk [vmem:[#allocation2] sm:$0x3] %vm1589, %v1586
    // Predicated region
    $region10: #{han_forward.1} parent=1 // pred_check
      _
    $region11: #{han_forward.1} parent=1 // pred_check_branch
      %1592 = sbr.rel (0) target = $region13
    $region12: #{han_forward.1} parent=1 // pred_region
      %s1594 = ssub.s32 32, 32
      %1595 = vsyncadd [#allocation3], %s1594
      %s1597 = sshll.u32 [#allocation2], 4
      %s1598 = int_to_ptr.vmem [resolvable:$true] %s1597
      %1600 = dma.vmem_to_hbm [thread:$0]  %s1598, 32, %s2, [#allocation3]
    $region13: #{han_forward.1} parent=1 // pred_fallthru
      _
    // Predicated region
    $region14: #{han_forward.1} parent=1 // pred_check
      _
    $region15: #{han_forward.1} parent=1 // pred_check_branch
      %1602 = sbr.rel (0) target = $region17
    $region16: #{han_forward.1} parent=1 // pred_region
      %1603 = dma.done [#allocation3], 32
    $region17: #{han_forward.1} parent=1 // pred_fallthru
      _
    %1604 = vsyncpa [#allocation3], 1

</llo_original>
